<compile_context>
chip_gen: v6e
topology: v6e:2x2x1
jax: 0.10.0
libtpu: 0.0.40
codegen_flags: <defaults>
</compile_context>

<pallas_src>
import functools

import jax
import jax.numpy as jnp
from jax.experimental import pallas as pl
from jax.experimental.pallas import tpu as pltpu


def _round_up(x, m):
    return ((x + m - 1) // m) * m


def _cdiv(a, b):
    return -(-a // b)


# ----------------------------------------------------------------------------
# Fused kernel:  o = (tanh( tanh(x) @ W0 + b0 )) @ W1 + b1
# ----------------------------------------------------------------------------
def _modelfc_kernel(x_ref, w0_ref, b0_ref, w1_ref, b1_ref, o_ref):
    # act0 in f32 on the VPU/EUP (keeps v5e happy; v6e/v7x could stream bf16).
    x = jnp.tanh(x_ref[...].astype(jnp.float32))
    # lin0: bf16 operands on the MXU, f32 accumulation.
    h = jnp.dot(x.astype(jnp.bfloat16), w0_ref[...],
                preferred_element_type=jnp.float32)
    h = jnp.tanh(h + b0_ref[...])
    # lin1 (output lanes padded to a multiple of 128 -> unmasked stores).
    y = jnp.dot(h.astype(jnp.bfloat16), w1_ref[...],
                preferred_element_type=jnp.float32)
    o_ref[...] = (y + b1_ref[...]).astype(o_ref.dtype)


def _pick_block_m(m):
    """Always tile M; >=2 grid steps when M >= 16; cap at 512 rows."""
    if m < 16:
        return max(8, _round_up(m, 8))
    return min(512, _round_up(_cdiv(m, 2), 8))


def model_fc_forward(x, params, *, outputs_count):
    """x: (M, inputs_count) f32 -> (M, outputs_count) f32."""
    w0, b0, w1, b1 = params["w0"], params["b0"], params["w1"], params["b1"]
    M, K = x.shape
    K2, H = w0.shape
    H2, Np = w1.shape           # Np = outputs padded to a multiple of 128
    assert K == K2 and H == H2 and Np >= outputs_count

    block_m = _pick_block_m(M)
    grid = (_cdiv(M, block_m),)

    cost = pl.CostEstimate(
        flops=2 * M * (K * H + H * Np),
        transcendentals=M * (K + H),
        bytes_accessed=(M * K * 4 + K * H * 2 + H * 4
                        + H * Np * 2 + Np * 4 + M * Np * 4),
    )

    y_pad = pl.pallas_call(
        _modelfc_kernel,
        grid=grid,
        in_specs=[
            pl.BlockSpec((block_m, K), lambda i: (i, 0)),   # x, tiled on M
            # Weights / biases are grid-invariant (index (0,0)) -> VMEM resident.
            # (If K/H ever grow large, single-buffer them via
            #  pipeline_mode=pl.Buffered(1) to halve their VMEM footprint.)
            pl.BlockSpec((K, H), lambda i: (0, 0)),          # W0
            pl.BlockSpec((1, H), lambda i: (0, 0)),          # b0
            pl.BlockSpec((H, Np), lambda i: (0, 0)),         # W1 (padded cols = 0)
            pl.BlockSpec((1, Np), lambda i: (0, 0)),         # b1 (padded lanes = 0)
        ],
        out_specs=pl.BlockSpec((block_m, Np), lambda i: (i, 0)),
        out_shape=jax.ShapeDtypeStruct((M, Np), jnp.float32),
        compiler_params=pltpu.CompilerParams(
            dimension_semantics=("parallel",)),
        cost_estimate=cost,
    )(x, w0, b0, w1, b1)

    # Drop the zero-padded output lanes.
    return y_pad[:, :outputs_count]


# ----------------------------------------------------------------------------
# Parameter init (orthogonal, gain 0.01, zero bias — same as the module).
# Weights are pre-transposed to (in, out), cast to bf16, and the output dim is
# zero-padded to a multiple of 128 ONCE, here.
# ----------------------------------------------------------------------------
def init_params(key, inputs_count, hidden_count, outputs_count):
    k0, k1 = jax.random.split(key, 2)
    ortho = jax.nn.initializers.orthogonal(scale=0.01)
    # torch layout: lin0.weight (hidden, inputs), lin1.weight (outputs, hidden)
    w0_t = ortho(k0, (hidden_count, inputs_count), jnp.float32)
    w1_t = ortho(k1, (outputs_count, hidden_count), jnp.float32)

    n_pad = max(128, _round_up(outputs_count, 128))
    w1 = w1_t.T                                             # (hidden, outputs)
    w1 = jnp.pad(w1, ((0, 0), (0, n_pad - outputs_count)))  # zero-pad lanes
    return {
        "w0": w0_t.T.astype(jnp.bfloat16),                  # (in, hidden)
        "b0": jnp.zeros((1, hidden_count), jnp.float32),
        "w1": w1.astype(jnp.bfloat16),                      # (hidden, n_pad)
        "b1": jnp.zeros((1, n_pad), jnp.float32),
    }


# Pure-JAX reference (same bf16-stored weights, f32 math) for a sanity check.
def _reference_forward(x, params, outputs_count):
    w0 = params["w0"].astype(jnp.float32)
    w1 = params["w1"].astype(jnp.float32)[:, :outputs_count]
    b1 = params["b1"][:, :outputs_count]
    y = jnp.tanh(x)
    y = jnp.tanh(y @ w0 + params["b0"])
    return y @ w1 + b1


if __name__ == "__main__":
    # Shapes consistent with how ModelFC is used in the PPO model:
    # inputs_count = 512 + 256 (features + rnn), hidden = 512, small action set.
    inputs_count = 768
    hidden_count = 512
    outputs_count = 7

    key = jax.random.PRNGKey(0)
    pkey, xkey, xkey2 = jax.random.split(key, 3)
    params = init_params(pkey, inputs_count, hidden_count, outputs_count)

    fwd = jax.jit(functools.partial(model_fc_forward,
                                    outputs_count=outputs_count))

    # Case 1: tiny inference batch (single 8-row block).
    batch = 8
    x = jax.random.normal(xkey, (batch, inputs_count), dtype=jnp.float32)
    y = fwd(x, params)
    jax.block_until_ready(y)
    assert y.shape == (batch, outputs_count)
    assert bool(jnp.all(jnp.isfinite(y)))
    y_ref = _reference_forward(x, params, outputs_count)
    assert bool(jnp.allclose(y, y_ref, atol=1e-2, rtol=1e-2)), "mismatch (small batch)"

    # Case 2: batch not a multiple of 8/128 -> exercises cdiv grid + masked
    # writeback of the partial last block and the >=2-step megacore split.
    batch2 = 200
    x2 = jax.random.normal(xkey2, (batch2, inputs_count), dtype=jnp.float32)
    y2 = fwd(x2, params)
    jax.block_until_ready(y2)
    assert y2.shape == (batch2, outputs_count)
    assert bool(jnp.all(jnp.isfinite(y2)))
    y2_ref = _reference_forward(x2, params, outputs_count)
    assert bool(jnp.allclose(y2, y2_ref, atol=1e-2, rtol=1e-2)), "mismatch (odd batch)"

    print("KERNEL_OK")
</pallas_src>

<mosaic_0001>
module attributes {stable_mosaic.version = 11 : i64} {
  func.func @_modelfc_kernel(%arg0: i32, %arg1: memref<8x768xf32, #tpu.memory_space<vmem>>, %arg2: memref<768x512xbf16, #tpu.memory_space<vmem>>, %arg3: memref<1x512xf32, #tpu.memory_space<vmem>>, %arg4: memref<512x128xbf16, #tpu.memory_space<vmem>>, %arg5: memref<1x128xf32, #tpu.memory_space<vmem>>, %arg6: memref<8x128xf32, #tpu.memory_space<vmem>>) attributes {dimension_semantics = [#tpu.dimension_semantics<parallel>], iteration_bounds = array<i64: 1>, scalar_prefetch = 0 : i64, scratch_operands = 0 : i64, tpu.core_type = #tpu.core_type<tc>, window_params = [{transform_indices = @transform_0, window_bounds = array<i64: 8, 768>}, {pipeline_mode = #tpu.pipeline_mode<synchronous>, transform_indices = @transform_1, window_bounds = array<i64: 768, 512>}, {pipeline_mode = #tpu.pipeline_mode<synchronous>, transform_indices = @transform_2, window_bounds = array<i64: 1, 512>}, {pipeline_mode = #tpu.pipeline_mode<synchronous>, transform_indices = @transform_3, window_bounds = array<i64: 512, 128>}, {pipeline_mode = #tpu.pipeline_mode<synchronous>, transform_indices = @transform_4, window_bounds = array<i64: 1, 128>}, {transform_indices = @transform_5, window_bounds = array<i64: 8, 128>}]} {
    %c0 = arith.constant 0 : index
    %c0_0 = arith.constant 0 : index
    %0 = vector.load %arg1[%c0, %c0_0] : memref<8x768xf32, #tpu.memory_space<vmem>>, vector<8x768xf32>
    %1 = math.tanh %0 : vector<8x768xf32>
    %2 = arith.truncf %1 : vector<8x768xf32> to vector<8x768xbf16>
    %c0_1 = arith.constant 0 : index
    %c0_2 = arith.constant 0 : index
    %3 = vector.load %arg2[%c0_1, %c0_2] : memref<768x512xbf16, #tpu.memory_space<vmem>>, vector<768x512xbf16>
    %cst = arith.constant dense<0.000000e+00> : vector<8x512xf32>
    %4 = tpu.matmul %2, %3, %cst {dimension_numbers = #tpu.dot_dimension_numbers<[1], [0], [0], [1], [0, 0, 1, 1], [], []>} : vector<8x768xbf16>, vector<768x512xbf16>, vector<8x512xf32> -> vector<8x512xf32>
    %c0_3 = arith.constant 0 : index
    %c0_4 = arith.constant 0 : index
    %5 = vector.load %arg3[%c0_3, %c0_4] : memref<1x512xf32, #tpu.memory_space<vmem>>, vector<1x512xf32>
    %6 = vector.broadcast %5 : vector<1x512xf32> to vector<8x512xf32>
    %7 = arith.addf %4, %6 : vector<8x512xf32>
    %8 = math.tanh %7 : vector<8x512xf32>
    %9 = arith.truncf %8 : vector<8x512xf32> to vector<8x512xbf16>
    %c0_5 = arith.constant 0 : index
    %c0_6 = arith.constant 0 : index
    %10 = vector.load %arg4[%c0_5, %c0_6] : memref<512x128xbf16, #tpu.memory_space<vmem>>, vector<512x128xbf16>
    %cst_7 = arith.constant dense<0.000000e+00> : vector<8x128xf32>
    %11 = tpu.matmul %9, %10, %cst_7 {dimension_numbers = #tpu.dot_dimension_numbers<[1], [0], [0], [1], [0, 0, 1, 1], [], []>} : vector<8x512xbf16>, vector<512x128xbf16>, vector<8x128xf32> -> vector<8x128xf32>
    %c0_8 = arith.constant 0 : index
    %c0_9 = arith.constant 0 : index
    %12 = vector.load %arg5[%c0_8, %c0_9] : memref<1x128xf32, #tpu.memory_space<vmem>>, vector<1x128xf32>
    %13 = vector.broadcast %12 : vector<1x128xf32> to vector<8x128xf32>
    %14 = arith.addf %11, %13 : vector<8x128xf32>
    %c0_10 = arith.constant 0 : index
    %c0_11 = arith.constant 0 : index
    %15 = vector.load %arg6[%c0_10, %c0_11] : memref<8x128xf32, #tpu.memory_space<vmem>>, vector<8x128xf32>
    tpu.vector_store %arg6[%c0_10, %c0_11], %14 {strides = array<i32>} : memref<8x128xf32, #tpu.memory_space<vmem>>, vector<8x128xf32>,
    return
  }
  func.func @transform_0(%arg0: i32) -> (i32, i32) {
    %c0_i32 = arith.constant 0 : i32
    %c0_i32_0 = arith.constant 0 : i32
    return %arg0, %c0_i32 : i32, i32
  }
  func.func @transform_1(%arg0: i32) -> (i32, i32) {
    %c0_i32 = arith.constant 0 : i32
    %c0_i32_0 = arith.constant 0 : i32
    %c0_i32_1 = arith.constant 0 : i32
    return %c0_i32, %c0_i32_0 : i32, i32
  }
  func.func @transform_2(%arg0: i32) -> (i32, i32) {
    %c0_i32 = arith.constant 0 : i32
    %c0_i32_0 = arith.constant 0 : i32
    %c0_i32_1 = arith.constant 0 : i32
    return %c0_i32, %c0_i32_0 : i32, i32
  }
  func.func @transform_3(%arg0: i32) -> (i32, i32) {
    %c0_i32 = arith.constant 0 : i32
    %c0_i32_0 = arith.constant 0 : i32
    %c0_i32_1 = arith.constant 0 : i32
    return %c0_i32, %c0_i32_0 : i32, i32
  }
  func.func @transform_4(%arg0: i32) -> (i32, i32) {
    %c0_i32 = arith.constant 0 : i32
    %c0_i32_0 = arith.constant 0 : i32
    %c0_i32_1 = arith.constant 0 : i32
    return %c0_i32, %c0_i32_0 : i32, i32
  }
  func.func @transform_5(%arg0: i32) -> (i32, i32) {
    %c0_i32 = arith.constant 0 : i32
    %c0_i32_0 = arith.constant 0 : i32
    return %arg0, %c0_i32 : i32, i32
  }
}

</mosaic_0001>

<llo_original>
// kernel: model_fc_forward.1
$region0: #{model_fc_forward.1}
  #allocation0 [shape = 'u32[]', space=smem, size = 0x4, offset = 0x4, fixed_abs, tag = 'smem constant byte address 0x4 - core index']
  #allocation1 [shape = 'u32[144,128]{1,0:T(1,128)}', space=vmem, size = 0x12000, scoped, tag = 'internal scratch']
  %s0 = inlined_call_operand.hbm [shape: f32[8,768], index: 0, kind: input, shape index: {}]
  %s1 = inlined_call_operand.hbm [shape: bf16[768,512], index: 1, kind: input, shape index: {}]
  %s2 = inlined_call_operand.hbm [shape: f32[1,512], index: 2, kind: input, shape index: {}]
  %s3 = inlined_call_operand.hbm [shape: bf16[512,128], index: 3, kind: input, shape index: {}]
  %s4 = inlined_call_operand.vmem [shape: f32[1,128], index: 4, kind: input, shape index: {}]
  %s5 = inlined_call_operand.hbm [shape: f32[8,128], index: 5, kind: output, shape index: {}]
  %s6 = sld [smem:[#allocation0]]
  $region46: #{model_fc_forward.1} parent=0
    _
  %s8 = ssub.s32 1, %s6
  %s9 = scalar_select 0, %s8, %s6
  $region1: #{model_fc_forward.1} parent=0
    #allocation2 [shape = 'u8[24576]{0}', space=vmem, size = 0x6000, scoped, tag = 'input window, operand 0, single buffered']
    #allocation3 [shape = 's32[1]{0}', space=sflag, size = 0x4, scoped, tag = 'scoped memory for model_fc_forward.1']
    #allocation4 [shape = 's32[1]{0}', space=sflag, size = 0x4, scoped, tag = 'scoped memory for model_fc_forward.1']
    #allocation5 [shape = 'u8[786432]{0}', space=vmem, size = 0xc0000, scoped, tag = 'input window, operand 1, single buffered']
    #allocation6 [shape = 's32[1]{0}', space=sflag, size = 0x4, scoped, tag = 'scoped memory for model_fc_forward.1']
    #allocation7 [shape = 'u8[2048]{0}', space=vmem, size = 0x800, scoped, tag = 'input window, operand 2, single buffered']
    #allocation8 [shape = 'u8[131072]{0}', space=vmem, size = 0x20000, scoped, tag = 'input window, operand 3, single buffered']
    #allocation9 [shape = 's32[1]{0}', space=sflag, size = 0x4, scoped, tag = 'scoped memory for model_fc_forward.1']
    #allocation10 [shape = 'u8[4096]{0}', space=vmem, size = 0x1000, scoped, tag = 'output window, operand 0, single buffered']
    %10 = vsyncpa [#allocation3], 0
    %11 = vsyncpa [#allocation6], 0
    %12 = vsyncpa [#allocation9], 0
    %13 = vsyncpa [#allocation4], 0
    // Predicated region
    $region2: #{model_fc_forward.1} parent=1 // pred_check
      _
    $region3: #{model_fc_forward.1} parent=1 // pred_check_branch
      %15 = sbr.rel (0) target = $region5
    $region4: #{model_fc_forward.1} parent=1 // pred_region
      %s17 = ssub.s32 768, 768
      %18 = vsyncadd [#allocation3], %s17
      %s20 = sshll.u32 [#allocation2], 4
      %s21 = int_to_ptr.vmem [resolvable:$true] %s20
      %23 = dma.hbm_to_vmem [thread:$0]  %s0, 768, %s21, [#allocation3]
    $region5: #{model_fc_forward.1} parent=1 // pred_fallthru
      _
    // Predicated region
    $region6: #{model_fc_forward.1} parent=1 // pred_check
      _
    $region7: #{model_fc_forward.1} parent=1 // pred_check_branch
      %25 = sbr.rel (0) target = $region9
    $region8: #{model_fc_forward.1} parent=1 // pred_region
      %s27 = ssub.s32 24576, 24576
      %28 = vsyncadd [#allocation6], %s27
      %s29 = sshll.u32 [#allocation5], 4
      %s30 = int_to_ptr.vmem [resolvable:$true] %s29
      %35 = dma.hbm_to_vmem [thread:$0]  %s1, 24576, %s30, [#allocation6], 256, 256, 16
    $region9: #{model_fc_forward.1} parent=1 // pred_fallthru
      _
    // Predicated region
    $region10: #{model_fc_forward.1} parent=1 // pred_check
      _
    $region11: #{model_fc_forward.1} parent=1 // pred_check_branch
      %37 = sbr.rel (0) target = $region13
    $region12: #{model_fc_forward.1} parent=1 // pred_region
      %s39 = ssub.s32 64, 64
      %40 = vsyncadd [#allocation6], %s39
      %s42 = sshll.u32 [#allocation7], 4
      %s43 = int_to_ptr.vmem [resolvable:$true] %s42
      %45 = dma.hbm_to_vmem [thread:$0]  %s2, 64, %s43, [#allocation6]
    $region13: #{model_fc_forward.1} parent=1 // pred_fallthru
      _
    // Predicated region
    $region14: #{model_fc_forward.1} parent=1 // pred_check
      _
    $region15: #{model_fc_forward.1} parent=1 // pred_check_branch
      %47 = sbr.rel (0) target = $region17
    $region16: #{model_fc_forward.1} parent=1 // pred_region
      %s49 = ssub.s32 4096, 4096
      %50 = vsyncadd [#allocation9], %s49
      %s51 = sshll.u32 [#allocation8], 4
      %s52 = int_to_ptr.vmem [resolvable:$true] %s51
      %57 = dma.hbm_to_vmem [thread:$0]  %s3, 4096, %s52, [#allocation9], 64, 64, 4
    $region17: #{model_fc_forward.1} parent=1 // pred_fallthru
      _
    // Predicated region
    $region18: #{model_fc_forward.1} parent=1 // pred_check
      _
    $region19: #{model_fc_forward.1} parent=1 // pred_check_branch
      %59 = sbr.rel (0) target = $region21
    $region20: #{model_fc_forward.1} parent=1 // pred_region
      _
    $region21: #{model_fc_forward.1} parent=1 // pred_fallthru
      _
    // Predicated region
    $region22: #{model_fc_forward.1} parent=1 // pred_check
      _
    $region23: #{model_fc_forward.1} parent=1 // pred_check_branch
      %61 = sbr.rel (0) target = $region25
    $region24: #{model_fc_forward.1} parent=1 // pred_region
      %62 = dma.done [#allocation3], 768
    $region25: #{model_fc_forward.1} parent=1 // pred_fallthru
      _
    // Predicated region
    $region26: #{model_fc_forward.1} parent=1 // pred_check
      _
    $region27: #{model_fc_forward.1} parent=1 // pred_check_branch
      %64 = sbr.rel (0) target = $region29
    $region28: #{model_fc_forward.1} parent=1 // pred_region
      %65 = dma.done [#allocation6], 24576
    $region29: #{model_fc_forward.1} parent=1 // pred_fallthru
      _
    // Predicated region
    $region30: #{model_fc_forward.1} parent=1 // pred_check
      _
    $region31: #{model_fc_forward.1} parent=1 // pred_check_branch
      %67 = sbr.rel (0) target = $region33
    $region32: #{model_fc_forward.1} parent=1 // pred_region
      %68 = dma.done [#allocation6], 64
    $region33: #{model_fc_forward.1} parent=1 // pred_fallthru
      _
    // Predicated region
    $region34: #{model_fc_forward.1} parent=1 // pred_check
      _
    $region35: #{model_fc_forward.1} parent=1 // pred_check_branch
      %70 = sbr.rel (0) target = $region37
    $region36: #{model_fc_forward.1} parent=1 // pred_region
      %71 = dma.done [#allocation9], 4096
    $region37: #{model_fc_forward.1} parent=1 // pred_fallthru
      _
    %v73 = vld [vmem:[#allocation2] sm:$0xff]
    %v74 = vld [vmem:[#allocation2 + $0x8] sm:$0xff]
    %v75 = vld [vmem:[#allocation2 + $0x10] sm:$0xff]
    %v76 = vld [vmem:[#allocation2 + $0x18] sm:$0xff]
    %v77 = vld [vmem:[#allocation2 + $0x20] sm:$0xff]
    %v78 = vld [vmem:[#allocation2 + $0x28] sm:$0xff]
    %v79 = vtanh.pop %v73
    %v80 = vtanh.pop %v74
    %v81 = vtanh.pop %v75
    %v82 = vtanh.pop %v76
    %v83 = vtanh.pop %v77
    %v84 = vtanh.pop %v78
    %v85 = vpack.c.bf16 %v79, %v79
    %v86 = vpack.c.bf16 %v80, %v80
    %v87 = vpack.c.bf16 %v81, %v81
    %v88 = vpack.c.bf16 %v82, %v82
    %v89 = vpack.c.bf16 %v83, %v83
    %v90 = vpack.c.bf16 %v84, %v84
    %v91 = vld [vmem:[#allocation5] sm:$0xff]
    %v92 = vld [vmem:[#allocation5 + $0x8] sm:$0xff]
    %v93 = vld [vmem:[#allocation5 + $0x10] sm:$0xff]
    %v94 = vld [vmem:[#allocation5 + $0x18] sm:$0xff]
    %v95 = vld [vmem:[#allocation5 + $0x20] sm:$0xff]
    %v96 = vld [vmem:[#allocation5 + $0x28] sm:$0xff]
    %v97 = vld [vmem:[#allocation5 + $0x30] sm:$0xff]
    %v98 = vld [vmem:[#allocation5 + $0x38] sm:$0xff]
    %v99 = vld [vmem:[#allocation5 + $0x40] sm:$0xff]
    %v100 = vld [vmem:[#allocation5 + $0x48] sm:$0xff]
    %v101 = vld [vmem:[#allocation5 + $0x50] sm:$0xff]
    %v102 = vld [vmem:[#allocation5 + $0x58] sm:$0xff]
    %v103 = vld [vmem:[#allocation5 + $0x60] sm:$0xff]
    %v104 = vld [vmem:[#allocation5 + $0x68] sm:$0xff]
    %v105 = vld [vmem:[#allocation5 + $0x70] sm:$0xff]
    %v106 = vld [vmem:[#allocation5 + $0x78] sm:$0xff]
    %v107 = vld [vmem:[#allocation5 + $0x80] sm:$0xff]
    %v108 = vld [vmem:[#allocation5 + $0x88] sm:$0xff]
    %v109 = vld [vmem:[#allocation5 + $0x90] sm:$0xff]
    %v110 = vld [vmem:[#allocation5 + $0x98] sm:$0xff]
    %v111 = vld [vmem:[#allocation5 + $0xa0] sm:$0xff]
    %v112 = vld [vmem:[#allocation5 + $0xa8] sm:$0xff]
    %v113 = vld [vmem:[#allocation5 + $0xb0] sm:$0xff]
    %v114 = vld [vmem:[#allocation5 + $0xb8] sm:$0xff]
    %v115 = vld [vmem:[#allocation5 + $0xc0] sm:$0xff]
    %v116 = vld [vmem:[#allocation5 + $0xc8] sm:$0xff]
    %v117 = vld [vmem:[#allocation5 + $0xd0] sm:$0xff]
    %v118 = vld [vmem:[#allocation5 + $0xd8] sm:$0xff]
    %v119 = vld [vmem:[#allocation5 + $0xe0] sm:$0xff]
    %v120 = vld [vmem:[#allocation5 + $0xe8] sm:$0xff]
    %v121 = vld [vmem:[#allocation5 + $0xf0] sm:$0xff]
    %v122 = vld [vmem:[#allocation5 + $0xf8] sm:$0xff]
    %v123 = vld [vmem:[#allocation5 + $0x100] sm:$0xff]
    %v124 = vld [vmem:[#allocation5 + $0x108] sm:$0xff]
    %v125 = vld [vmem:[#allocation5 + $0x110] sm:$0xff]
    %v126 = vld [vmem:[#allocation5 + $0x118] sm:$0xff]
    %v127 = vld [vmem:[#allocation5 + $0x120] sm:$0xff]
    %v128 = vld [vmem:[#allocation5 + $0x128] sm:$0xff]
    %v129 = vld [vmem:[#allocation5 + $0x130] sm:$0xff]
    %v130 = vld [vmem:[#allocation5 + $0x138] sm:$0xff]
    %v131 = vld [vmem:[#allocation5 + $0x140] sm:$0xff]
    %v132 = vld [vmem:[#allocation5 + $0x148] sm:$0xff]
    %v133 = vld [vmem:[#allocation5 + $0x150] sm:$0xff]
    %v134 = vld [vmem:[#allocation5 + $0x158] sm:$0xff]
    %v135 = vld [vmem:[#allocation5 + $0x160] sm:$0xff]
    %v136 = vld [vmem:[#allocation5 + $0x168] sm:$0xff]
    %v137 = vld [vmem:[#allocation5 + $0x170] sm:$0xff]
    %v138 = vld [vmem:[#allocation5 + $0x178] sm:$0xff]
    %v139 = vld [vmem:[#allocation5 + $0x180] sm:$0xff]
    %v140 = vld [vmem:[#allocation5 + $0x188] sm:$0xff]
    %v141 = vld [vmem:[#allocation5 + $0x190] sm:$0xff]
    %v142 = vld [vmem:[#allocation5 + $0x198] sm:$0xff]
    %v143 = vld [vmem:[#allocation5 + $0x1a0] sm:$0xff]
    %v144 = vld [vmem:[#allocation5 + $0x1a8] sm:$0xff]
    %v145 = vld [vmem:[#allocation5 + $0x1b0] sm:$0xff]
    %v146 = vld [vmem:[#allocation5 + $0x1b8] sm:$0xff]
    %v147 = vld [vmem:[#allocation5 + $0x1c0] sm:$0xff]
    %v148 = vld [vmem:[#allocation5 + $0x1c8] sm:$0xff]
    %v149 = vld [vmem:[#allocation5 + $0x1d0] sm:$0xff]
    %v150 = vld [vmem:[#allocation5 + $0x1d8] sm:$0xff]
    %v151 = vld [vmem:[#allocation5 + $0x1e0] sm:$0xff]
    %v152 = vld [vmem:[#allocation5 + $0x1e8] sm:$0xff]
    %v153 = vld [vmem:[#allocation5 + $0x1f0] sm:$0xff]
    %v154 = vld [vmem:[#allocation5 + $0x1f8] sm:$0xff]
    %v155 = vld [vmem:[#allocation5 + $0x200] sm:$0xff]
    %v156 = vld [vmem:[#allocation5 + $0x208] sm:$0xff]
    %v157 = vld [vmem:[#allocation5 + $0x210] sm:$0xff]
    %v158 = vld [vmem:[#allocation5 + $0x218] sm:$0xff]
    %v159 = vld [vmem:[#allocation5 + $0x220] sm:$0xff]
    %v160 = vld [vmem:[#allocation5 + $0x228] sm:$0xff]
    %v161 = vld [vmem:[#allocation5 + $0x230] sm:$0xff]
    %v162 = vld [vmem:[#allocation5 + $0x238] sm:$0xff]
    %v163 = vld [vmem:[#allocation5 + $0x240] sm:$0xff]
    %v164 = vld [vmem:[#allocation5 + $0x248] sm:$0xff]
    %v165 = vld [vmem:[#allocation5 + $0x250] sm:$0xff]
    %v166 = vld [vmem:[#allocation5 + $0x258] sm:$0xff]
    %v167 = vld [vmem:[#allocation5 + $0x260] sm:$0xff]
    %v168 = vld [vmem:[#allocation5 + $0x268] sm:$0xff]
    %v169 = vld [vmem:[#allocation5 + $0x270] sm:$0xff]
    %v170 = vld [vmem:[#allocation5 + $0x278] sm:$0xff]
    %v171 = vld [vmem:[#allocation5 + $0x280] sm:$0xff]
    %v172 = vld [vmem:[#allocation5 + $0x288] sm:$0xff]
    %v173 = vld [vmem:[#allocation5 + $0x290] sm:$0xff]
    %v174 = vld [vmem:[#allocation5 + $0x298] sm:$0xff]
    %v175 = vld [vmem:[#allocation5 + $0x2a0] sm:$0xff]
    %v176 = vld [vmem:[#allocation5 + $0x2a8] sm:$0xff]
    %v177 = vld [vmem:[#allocation5 + $0x2b0] sm:$0xff]
    %v178 = vld [vmem:[#allocation5 + $0x2b8] sm:$0xff]
    %v179 = vld [vmem:[#allocation5 + $0x2c0] sm:$0xff]
    %v180 = vld [vmem:[#allocation5 + $0x2c8] sm:$0xff]
    %v181 = vld [vmem:[#allocation5 + $0x2d0] sm:$0xff]
    %v182 = vld [vmem:[#allocation5 + $0x2d8] sm:$0xff]
    %v183 = vld [vmem:[#allocation5 + $0x2e0] sm:$0xff]
    %v184 = vld [vmem:[#allocation5 + $0x2e8] sm:$0xff]
    %v185 = vld [vmem:[#allocation5 + $0x2f0] sm:$0xff]
    %v186 = vld [vmem:[#allocation5 + $0x2f8] sm:$0xff]
    %v187 = vld [vmem:[#allocation5 + $0x300] sm:$0xff]
    %v188 = vld [vmem:[#allocation5 + $0x308] sm:$0xff]
    %v189 = vld [vmem:[#allocation5 + $0x310] sm:$0xff]
    %v190 = vld [vmem:[#allocation5 + $0x318] sm:$0xff]
    %v191 = vld [vmem:[#allocation5 + $0x320] sm:$0xff]
    %v192 = vld [vmem:[#allocation5 + $0x328] sm:$0xff]
    %v193 = vld [vmem:[#allocation5 + $0x330] sm:$0xff]
    %v194 = vld [vmem:[#allocation5 + $0x338] sm:$0xff]
    %v195 = vld [vmem:[#allocation5 + $0x340] sm:$0xff]
    %v196 = vld [vmem:[#allocation5 + $0x348] sm:$0xff]
    %v197 = vld [vmem:[#allocation5 + $0x350] sm:$0xff]
    %v198 = vld [vmem:[#allocation5 + $0x358] sm:$0xff]
    %v199 = vld [vmem:[#allocation5 + $0x360] sm:$0xff]
    %v200 = vld [vmem:[#allocation5 + $0x368] sm:$0xff]
    %v201 = vld [vmem:[#allocation5 + $0x370] sm:$0xff]
    %v202 = vld [vmem:[#allocation5 + $0x378] sm:$0xff]
    %v203 = vld [vmem:[#allocation5 + $0x380] sm:$0xff]
    %v204 = vld [vmem:[#allocation5 + $0x388] sm:$0xff]
    %v205 = vld [vmem:[#allocation5 + $0x390] sm:$0xff]
    %v206 = vld [vmem:[#allocation5 + $0x398] sm:$0xff]
    %v207 = vld [vmem:[#allocation5 + $0x3a0] sm:$0xff]
    %v208 = vld [vmem:[#allocation5 + $0x3a8] sm:$0xff]
    %v209 = vld [vmem:[#allocation5 + $0x3b0] sm:$0xff]
    %v210 = vld [vmem:[#allocation5 + $0x3b8] sm:$0xff]
    %v211 = vld [vmem:[#allocation5 + $0x3c0] sm:$0xff]
    %v212 = vld [vmem:[#allocation5 + $0x3c8] sm:$0xff]
    %v213 = vld [vmem:[#allocation5 + $0x3d0] sm:$0xff]
    %v214 = vld [vmem:[#allocation5 + $0x3d8] sm:$0xff]
    %v215 = vld [vmem:[#allocation5 + $0x3e0] sm:$0xff]
    %v216 = vld [vmem:[#allocation5 + $0x3e8] sm:$0xff]
    %v217 = vld [vmem:[#allocation5 + $0x3f0] sm:$0xff]
    %v218 = vld [vmem:[#allocation5 + $0x3f8] sm:$0xff]
    %v219 = vld [vmem:[#allocation5 + $0x400] sm:$0xff]
    %v220 = vld [vmem:[#allocation5 + $0x408] sm:$0xff]
    %v221 = vld [vmem:[#allocation5 + $0x410] sm:$0xff]
    %v222 = vld [vmem:[#allocation5 + $0x418] sm:$0xff]
    %v223 = vld [vmem:[#allocation5 + $0x420] sm:$0xff]
    %v224 = vld [vmem:[#allocation5 + $0x428] sm:$0xff]
    %v225 = vld [vmem:[#allocation5 + $0x430] sm:$0xff]
    %v226 = vld [vmem:[#allocation5 + $0x438] sm:$0xff]
    %v227 = vld [vmem:[#allocation5 + $0x440] sm:$0xff]
    %v228 = vld [vmem:[#allocation5 + $0x448] sm:$0xff]
    %v229 = vld [vmem:[#allocation5 + $0x450] sm:$0xff]
    %v230 = vld [vmem:[#allocation5 + $0x458] sm:$0xff]
    %v231 = vld [vmem:[#allocation5 + $0x460] sm:$0xff]
    %v232 = vld [vmem:[#allocation5 + $0x468] sm:$0xff]
    %v233 = vld [vmem:[#allocation5 + $0x470] sm:$0xff]
    %v234 = vld [vmem:[#allocation5 + $0x478] sm:$0xff]
    %v235 = vld [vmem:[#allocation5 + $0x480] sm:$0xff]
    %v236 = vld [vmem:[#allocation5 + $0x488] sm:$0xff]
    %v237 = vld [vmem:[#allocation5 + $0x490] sm:$0xff]
    %v238 = vld [vmem:[#allocation5 + $0x498] sm:$0xff]
    %v239 = vld [vmem:[#allocation5 + $0x4a0] sm:$0xff]
    %v240 = vld [vmem:[#allocation5 + $0x4a8] sm:$0xff]
    %v241 = vld [vmem:[#allocation5 + $0x4b0] sm:$0xff]
    %v242 = vld [vmem:[#allocation5 + $0x4b8] sm:$0xff]
    %v243 = vld [vmem:[#allocation5 + $0x4c0] sm:$0xff]
    %v244 = vld [vmem:[#allocation5 + $0x4c8] sm:$0xff]
    %v245 = vld [vmem:[#allocation5 + $0x4d0] sm:$0xff]
    %v246 = vld [vmem:[#allocation5 + $0x4d8] sm:$0xff]
    %v247 = vld [vmem:[#allocation5 + $0x4e0] sm:$0xff]
    %v248 = vld [vmem:[#allocation5 + $0x4e8] sm:$0xff]
    %v249 = vld [vmem:[#allocation5 + $0x4f0] sm:$0xff]
    %v250 = vld [vmem:[#allocation5 + $0x4f8] sm:$0xff]
    %v251 = vld [vmem:[#allocation5 + $0x500] sm:$0xff]
    %v252 = vld [vmem:[#allocation5 + $0x508] sm:$0xff]
    %v253 = vld [vmem:[#allocation5 + $0x510] sm:$0xff]
    %v254 = vld [vmem:[#allocation5 + $0x518] sm:$0xff]
    %v255 = vld [vmem:[#allocation5 + $0x520] sm:$0xff]
    %v256 = vld [vmem:[#allocation5 + $0x528] sm:$0xff]
    %v257 = vld [vmem:[#allocation5 + $0x530] sm:$0xff]
    %v258 = vld [vmem:[#allocation5 + $0x538] sm:$0xff]
    %v259 = vld [vmem:[#allocation5 + $0x540] sm:$0xff]
    %v260 = vld [vmem:[#allocation5 + $0x548] sm:$0xff]
    %v261 = vld [vmem:[#allocation5 + $0x550] sm:$0xff]
    %v262 = vld [vmem:[#allocation5 + $0x558] sm:$0xff]
    %v263 = vld [vmem:[#allocation5 + $0x560] sm:$0xff]
    %v264 = vld [vmem:[#allocation5 + $0x568] sm:$0xff]
    %v265 = vld [vmem:[#allocation5 + $0x570] sm:$0xff]
    %v266 = vld [vmem:[#allocation5 + $0x578] sm:$0xff]
    %v267 = vld [vmem:[#allocation5 + $0x580] sm:$0xff]
    %v268 = vld [vmem:[#allocation5 + $0x588] sm:$0xff]
    %v269 = vld [vmem:[#allocation5 + $0x590] sm:$0xff]
    %v270 = vld [vmem:[#allocation5 + $0x598] sm:$0xff]
    %v271 = vld [vmem:[#allocation5 + $0x5a0] sm:$0xff]
    %v272 = vld [vmem:[#allocation5 + $0x5a8] sm:$0xff]
    %v273 = vld [vmem:[#allocation5 + $0x5b0] sm:$0xff]
    %v274 = vld [vmem:[#allocation5 + $0x5b8] sm:$0xff]
    %v275 = vld [vmem:[#allocation5 + $0x5c0] sm:$0xff]
    %v276 = vld [vmem:[#allocation5 + $0x5c8] sm:$0xff]
    %v277 = vld [vmem:[#allocation5 + $0x5d0] sm:$0xff]
    %v278 = vld [vmem:[#allocation5 + $0x5d8] sm:$0xff]
    %v279 = vld [vmem:[#allocation5 + $0x5e0] sm:$0xff]
    %v280 = vld [vmem:[#allocation5 + $0x5e8] sm:$0xff]
    %v281 = vld [vmem:[#allocation5 + $0x5f0] sm:$0xff]
    %v282 = vld [vmem:[#allocation5 + $0x5f8] sm:$0xff]
    %v283 = vld [vmem:[#allocation7] sm:$0xf]
    %v285 = vlaneseq
    %v286 = vshrl.u32 %v285, 7
    %v287 = vsub.s32 0, %v286
    %v288 = vrot.slane %v283, %v287
    %v289 = vlaneseq
    %v290 = vshrl.u32 %v289, 7
    %v291 = vsub.s32 1, %v290
    %v292 = vrot.slane %v283, %v291
    %v293 = vlaneseq
    %v294 = vshrl.u32 %v293, 7
    %v295 = vsub.s32 2, %v294
    %v296 = vrot.slane %v283, %v295
    %v297 = vlaneseq
    %v298 = vshrl.u32 %v297, 7
    %v299 = vsub.s32 3, %v298
    %v300 = vrot.slane %v283, %v299
    %v497 = vunpack.c.l.b16 %v91
    %v498 = vunpack.c.h.b16 %v91
    %v499 = vunpack.c.l.b16 %v92
    %v500 = vunpack.c.h.b16 %v92
    %v501 = vunpack.c.l.b16 %v93
    %v502 = vunpack.c.h.b16 %v93
    %v503 = vunpack.c.l.b16 %v94
    %v504 = vunpack.c.h.b16 %v94
    %v505 = vunpack.c.l.b16 %v95
    %v506 = vunpack.c.h.b16 %v95
    %v507 = vunpack.c.l.b16 %v96
    %v508 = vunpack.c.h.b16 %v96
    %v509 = vunpack.c.l.b16 %v97
    %v510 = vunpack.c.h.b16 %v97
    %v511 = vunpack.c.l.b16 %v98
    %v512 = vunpack.c.h.b16 %v98
    %v513 = vunpack.c.l.b16 %v99
    %v514 = vunpack.c.h.b16 %v99
    %v515 = vunpack.c.l.b16 %v100
    %v516 = vunpack.c.h.b16 %v100
    %v517 = vunpack.c.l.b16 %v101
    %v518 = vunpack.c.h.b16 %v101
    %v519 = vunpack.c.l.b16 %v102
    %v520 = vunpack.c.h.b16 %v102
    %v521 = vunpack.c.l.b16 %v103
    %v522 = vunpack.c.h.b16 %v103
    %v523 = vunpack.c.l.b16 %v104
    %v524 = vunpack.c.h.b16 %v104
    %v525 = vunpack.c.l.b16 %v105
    %v526 = vunpack.c.h.b16 %v105
    %v527 = vunpack.c.l.b16 %v106
    %v528 = vunpack.c.h.b16 %v106
    %v529 = vunpack.c.l.b16 %v107
    %v530 = vunpack.c.h.b16 %v107
    %v531 = vunpack.c.l.b16 %v108
    %v532 = vunpack.c.h.b16 %v108
    %v533 = vunpack.c.l.b16 %v109
    %v534 = vunpack.c.h.b16 %v109
    %v535 = vunpack.c.l.b16 %v110
    %v536 = vunpack.c.h.b16 %v110
    %v537 = vunpack.c.l.b16 %v111
    %v538 = vunpack.c.h.b16 %v111
    %v539 = vunpack.c.l.b16 %v112
    %v540 = vunpack.c.h.b16 %v112
    %v541 = vunpack.c.l.b16 %v113
    %v542 = vunpack.c.h.b16 %v113
    %v543 = vunpack.c.l.b16 %v114
    %v544 = vunpack.c.h.b16 %v114
    %v545 = vunpack.c.l.b16 %v115
    %v546 = vunpack.c.h.b16 %v115
    %v547 = vunpack.c.l.b16 %v116
    %v548 = vunpack.c.h.b16 %v116
    %v549 = vunpack.c.l.b16 %v117
    %v550 = vunpack.c.h.b16 %v117
    %v551 = vunpack.c.l.b16 %v118
    %v552 = vunpack.c.h.b16 %v118
    %v553 = vunpack.c.l.b16 %v119
    %v554 = vunpack.c.h.b16 %v119
    %v555 = vunpack.c.l.b16 %v120
    %v556 = vunpack.c.h.b16 %v120
    %v557 = vunpack.c.l.b16 %v121
    %v558 = vunpack.c.h.b16 %v121
    %v559 = vunpack.c.l.b16 %v122
    %v560 = vunpack.c.h.b16 %v122
    %v561 = vunpack.c.l.b16 %v123
    %v562 = vunpack.c.h.b16 %v123
    %v563 = vunpack.c.l.b16 %v124
    %v564 = vunpack.c.h.b16 %v124
    %v565 = vunpack.c.l.b16 %v125
    %v566 = vunpack.c.h.b16 %v125
    %v567 = vunpack.c.l.b16 %v126
    %v568 = vunpack.c.h.b16 %v126
    %v569 = vunpack.c.l.b16 %v127
    %v570 = vunpack.c.h.b16 %v127
    %v571 = vunpack.c.l.b16 %v128
    %v572 = vunpack.c.h.b16 %v128
    %v573 = vunpack.c.l.b16 %v129
    %v574 = vunpack.c.h.b16 %v129
    %v575 = vunpack.c.l.b16 %v130
    %v576 = vunpack.c.h.b16 %v130
    %v577 = vunpack.c.l.b16 %v131
    %v578 = vunpack.c.h.b16 %v131
    %v579 = vunpack.c.l.b16 %v132
    %v580 = vunpack.c.h.b16 %v132
    %v581 = vunpack.c.l.b16 %v133
    %v582 = vunpack.c.h.b16 %v133
    %v583 = vunpack.c.l.b16 %v134
    %v584 = vunpack.c.h.b16 %v134
    %v585 = vunpack.c.l.b16 %v135
    %v586 = vunpack.c.h.b16 %v135
    %v587 = vunpack.c.l.b16 %v136
    %v588 = vunpack.c.h.b16 %v136
    %v589 = vunpack.c.l.b16 %v137
    %v590 = vunpack.c.h.b16 %v137
    %v591 = vunpack.c.l.b16 %v138
    %v592 = vunpack.c.h.b16 %v138
    %v593 = vunpack.c.l.b16 %v139
    %v594 = vunpack.c.h.b16 %v139
    %v595 = vunpack.c.l.b16 %v140
    %v596 = vunpack.c.h.b16 %v140
    %v597 = vunpack.c.l.b16 %v141
    %v598 = vunpack.c.h.b16 %v141
    %v599 = vunpack.c.l.b16 %v142
    %v600 = vunpack.c.h.b16 %v142
    %v601 = vunpack.c.l.b16 %v143
    %v602 = vunpack.c.h.b16 %v143
    %v603 = vunpack.c.l.b16 %v144
    %v604 = vunpack.c.h.b16 %v144
    %v605 = vunpack.c.l.b16 %v145
    %v606 = vunpack.c.h.b16 %v145
    %v607 = vunpack.c.l.b16 %v146
    %v608 = vunpack.c.h.b16 %v146
    %v609 = vunpack.c.l.b16 %v147
    %v610 = vunpack.c.h.b16 %v147
    %v611 = vunpack.c.l.b16 %v148
    %v612 = vunpack.c.h.b16 %v148
    %v613 = vunpack.c.l.b16 %v149
    %v614 = vunpack.c.h.b16 %v149
    %v615 = vunpack.c.l.b16 %v150
    %v616 = vunpack.c.h.b16 %v150
    %v617 = vunpack.c.l.b16 %v151
    %v618 = vunpack.c.h.b16 %v151
    %v619 = vunpack.c.l.b16 %v152
    %v620 = vunpack.c.h.b16 %v152
    %v621 = vunpack.c.l.b16 %v153
    %v622 = vunpack.c.h.b16 %v153
    %v623 = vunpack.c.l.b16 %v154
    %v624 = vunpack.c.h.b16 %v154
    %v625 = vunpack.c.l.b16 %v155
    %v626 = vunpack.c.h.b16 %v155
    %v627 = vunpack.c.l.b16 %v156
    %v628 = vunpack.c.h.b16 %v156
    %v629 = vunpack.c.l.b16 %v157
    %v630 = vunpack.c.h.b16 %v157
    %v631 = vunpack.c.l.b16 %v158
    %v632 = vunpack.c.h.b16 %v158
    %v633 = vunpack.c.l.b16 %v159
    %v634 = vunpack.c.h.b16 %v159
    %v635 = vunpack.c.l.b16 %v160
    %v636 = vunpack.c.h.b16 %v160
    %v637 = vunpack.c.l.b16 %v161
    %v638 = vunpack.c.h.b16 %v161
    %v639 = vunpack.c.l.b16 %v162
    %v640 = vunpack.c.h.b16 %v162
    %v641 = vunpack.c.l.b16 %v163
    %v642 = vunpack.c.h.b16 %v163
    %v643 = vunpack.c.l.b16 %v164
    %v644 = vunpack.c.h.b16 %v164
    %v645 = vunpack.c.l.b16 %v165
    %v646 = vunpack.c.h.b16 %v165
    %v647 = vunpack.c.l.b16 %v166
    %v648 = vunpack.c.h.b16 %v166
    %v649 = vunpack.c.l.b16 %v167
    %v650 = vunpack.c.h.b16 %v167
    %v651 = vunpack.c.l.b16 %v168
    %v652 = vunpack.c.h.b16 %v168
    %v653 = vunpack.c.l.b16 %v169
    %v654 = vunpack.c.h.b16 %v169
    %v655 = vunpack.c.l.b16 %v170
    %v656 = vunpack.c.h.b16 %v170
    %v657 = vunpack.c.l.b16 %v171
    %v658 = vunpack.c.h.b16 %v171
    %v659 = vunpack.c.l.b16 %v172
    %v660 = vunpack.c.h.b16 %v172
    %v661 = vunpack.c.l.b16 %v173
    %v662 = vunpack.c.h.b16 %v173
    %v663 = vunpack.c.l.b16 %v174
    %v664 = vunpack.c.h.b16 %v174
    %v665 = vunpack.c.l.b16 %v175
    %v666 = vunpack.c.h.b16 %v175
    %v667 = vunpack.c.l.b16 %v176
    %v668 = vunpack.c.h.b16 %v176
    %v669 = vunpack.c.l.b16 %v177
    %v670 = vunpack.c.h.b16 %v177
    %v671 = vunpack.c.l.b16 %v178
    %v672 = vunpack.c.h.b16 %v178
    %v673 = vunpack.c.l.b16 %v179
    %v674 = vunpack.c.h.b16 %v179
    %v675 = vunpack.c.l.b16 %v180
    %v676 = vunpack.c.h.b16 %v180
    %v677 = vunpack.c.l.b16 %v181
    %v678 = vunpack.c.h.b16 %v181
    %v679 = vunpack.c.l.b16 %v182
    %v680 = vunpack.c.h.b16 %v182
    %v681 = vunpack.c.l.b16 %v183
    %v682 = vunpack.c.h.b16 %v183
    %v683 = vunpack.c.l.b16 %v184
    %v684 = vunpack.c.h.b16 %v184
    %v685 = vunpack.c.l.b16 %v185
    %v686 = vunpack.c.h.b16 %v185
    %v687 = vunpack.c.l.b16 %v186
    %v688 = vunpack.c.h.b16 %v186
    %v689 = vunpack.c.l.b16 %v187
    %v690 = vunpack.c.h.b16 %v187
    %v691 = vunpack.c.l.b16 %v188
    %v692 = vunpack.c.h.b16 %v188
    %v693 = vunpack.c.l.b16 %v189
    %v694 = vunpack.c.h.b16 %v189
    %v695 = vunpack.c.l.b16 %v190
    %v696 = vunpack.c.h.b16 %v190
    %v697 = vunpack.c.l.b16 %v191
    %v698 = vunpack.c.h.b16 %v191
    %v699 = vunpack.c.l.b16 %v192
    %v700 = vunpack.c.h.b16 %v192
    %v701 = vunpack.c.l.b16 %v193
    %v702 = vunpack.c.h.b16 %v193
    %v703 = vunpack.c.l.b16 %v194
    %v704 = vunpack.c.h.b16 %v194
    %v705 = vunpack.c.l.b16 %v195
    %v706 = vunpack.c.h.b16 %v195
    %v707 = vunpack.c.l.b16 %v196
    %v708 = vunpack.c.h.b16 %v196
    %v709 = vunpack.c.l.b16 %v197
    %v710 = vunpack.c.h.b16 %v197
    %v711 = vunpack.c.l.b16 %v198
    %v712 = vunpack.c.h.b16 %v198
    %v713 = vunpack.c.l.b16 %v199
    %v714 = vunpack.c.h.b16 %v199
    %v715 = vunpack.c.l.b16 %v200
    %v716 = vunpack.c.h.b16 %v200
    %v717 = vunpack.c.l.b16 %v201
    %v718 = vunpack.c.h.b16 %v201
    %v719 = vunpack.c.l.b16 %v202
    %v720 = vunpack.c.h.b16 %v202
    %v721 = vunpack.c.l.b16 %v203
    %v722 = vunpack.c.h.b16 %v203
    %v723 = vunpack.c.l.b16 %v204
    %v724 = vunpack.c.h.b16 %v204
    %v725 = vunpack.c.l.b16 %v205
    %v726 = vunpack.c.h.b16 %v205
    %v727 = vunpack.c.l.b16 %v206
    %v728 = vunpack.c.h.b16 %v206
    %v729 = vunpack.c.l.b16 %v207
    %v730 = vunpack.c.h.b16 %v207
    %v731 = vunpack.c.l.b16 %v208
    %v732 = vunpack.c.h.b16 %v208
    %v733 = vunpack.c.l.b16 %v209
    %v734 = vunpack.c.h.b16 %v209
    %v735 = vunpack.c.l.b16 %v210
    %v736 = vunpack.c.h.b16 %v210
    %v737 = vunpack.c.l.b16 %v211
    %v738 = vunpack.c.h.b16 %v211
    %v739 = vunpack.c.l.b16 %v212
    %v740 = vunpack.c.h.b16 %v212
    %v741 = vunpack.c.l.b16 %v213
    %v742 = vunpack.c.h.b16 %v213
    %v743 = vunpack.c.l.b16 %v214
    %v744 = vunpack.c.h.b16 %v214
    %v745 = vunpack.c.l.b16 %v215
    %v746 = vunpack.c.h.b16 %v215
    %v747 = vunpack.c.l.b16 %v216
    %v748 = vunpack.c.h.b16 %v216
    %v749 = vunpack.c.l.b16 %v217
    %v750 = vunpack.c.h.b16 %v217
    %v751 = vunpack.c.l.b16 %v218
    %v752 = vunpack.c.h.b16 %v218
    %v753 = vunpack.c.l.b16 %v219
    %v754 = vunpack.c.h.b16 %v219
    %v755 = vunpack.c.l.b16 %v220
    %v756 = vunpack.c.h.b16 %v220
    %v757 = vunpack.c.l.b16 %v221
    %v758 = vunpack.c.h.b16 %v221
    %v759 = vunpack.c.l.b16 %v222
    %v760 = vunpack.c.h.b16 %v222
    %v761 = vunpack.c.l.b16 %v223
    %v762 = vunpack.c.h.b16 %v223
    %v763 = vunpack.c.l.b16 %v224
    %v764 = vunpack.c.h.b16 %v224
    %v765 = vunpack.c.l.b16 %v225
    %v766 = vunpack.c.h.b16 %v225
    %v767 = vunpack.c.l.b16 %v226
    %v768 = vunpack.c.h.b16 %v226
    %v769 = vunpack.c.l.b16 %v227
    %v770 = vunpack.c.h.b16 %v227
    %v771 = vunpack.c.l.b16 %v228
    %v772 = vunpack.c.h.b16 %v228
    %v773 = vunpack.c.l.b16 %v229
    %v774 = vunpack.c.h.b16 %v229
    %v775 = vunpack.c.l.b16 %v230
    %v776 = vunpack.c.h.b16 %v230
    %v777 = vunpack.c.l.b16 %v231
    %v778 = vunpack.c.h.b16 %v231
    %v779 = vunpack.c.l.b16 %v232
    %v780 = vunpack.c.h.b16 %v232
    %v781 = vunpack.c.l.b16 %v233
    %v782 = vunpack.c.h.b16 %v233
    %v783 = vunpack.c.l.b16 %v234
    %v784 = vunpack.c.h.b16 %v234
    %v785 = vunpack.c.l.b16 %v235
    %v786 = vunpack.c.h.b16 %v235
    %v787 = vunpack.c.l.b16 %v236
    %v788 = vunpack.c.h.b16 %v236
    %v789 = vunpack.c.l.b16 %v237
    %v790 = vunpack.c.h.b16 %v237
    %v791 = vunpack.c.l.b16 %v238
    %v792 = vunpack.c.h.b16 %v238
    %v793 = vunpack.c.l.b16 %v239
    %v794 = vunpack.c.h.b16 %v239
    %v795 = vunpack.c.l.b16 %v240
    %v796 = vunpack.c.h.b16 %v240
    %v797 = vunpack.c.l.b16 %v241
    %v798 = vunpack.c.h.b16 %v241
    %v799 = vunpack.c.l.b16 %v242
    %v800 = vunpack.c.h.b16 %v242
    %v801 = vunpack.c.l.b16 %v243
    %v802 = vunpack.c.h.b16 %v243
    %v803 = vunpack.c.l.b16 %v244
    %v804 = vunpack.c.h.b16 %v244
    %v805 = vunpack.c.l.b16 %v245
    %v806 = vunpack.c.h.b16 %v245
    %v807 = vunpack.c.l.b16 %v246
    %v808 = vunpack.c.h.b16 %v246
    %v809 = vunpack.c.l.b16 %v247
    %v810 = vunpack.c.h.b16 %v247
    %v811 = vunpack.c.l.b16 %v248
    %v812 = vunpack.c.h.b16 %v248
    %v813 = vunpack.c.l.b16 %v249
    %v814 = vunpack.c.h.b16 %v249
    %v815 = vunpack.c.l.b16 %v250
    %v816 = vunpack.c.h.b16 %v250
    %v817 = vunpack.c.l.b16 %v251
    %v818 = vunpack.c.h.b16 %v251
    %v819 = vunpack.c.l.b16 %v252
    %v820 = vunpack.c.h.b16 %v252
    %v821 = vunpack.c.l.b16 %v253
    %v822 = vunpack.c.h.b16 %v253
    %v823 = vunpack.c.l.b16 %v254
    %v824 = vunpack.c.h.b16 %v254
    %v825 = vunpack.c.l.b16 %v255
    %v826 = vunpack.c.h.b16 %v255
    %v827 = vunpack.c.l.b16 %v256
    %v828 = vunpack.c.h.b16 %v256
    %v829 = vunpack.c.l.b16 %v257
    %v830 = vunpack.c.h.b16 %v257
    %v831 = vunpack.c.l.b16 %v258
    %v832 = vunpack.c.h.b16 %v258
    %v833 = vunpack.c.l.b16 %v259
    %v834 = vunpack.c.h.b16 %v259
    %v835 = vunpack.c.l.b16 %v260
    %v836 = vunpack.c.h.b16 %v260
    %v837 = vunpack.c.l.b16 %v261
    %v838 = vunpack.c.h.b16 %v261
    %v839 = vunpack.c.l.b16 %v262
    %v840 = vunpack.c.h.b16 %v262
    %v841 = vunpack.c.l.b16 %v263
    %v842 = vunpack.c.h.b16 %v263
    %v843 = vunpack.c.l.b16 %v264
    %v844 = vunpack.c.h.b16 %v264
    %v845 = vunpack.c.l.b16 %v265
    %v846 = vunpack.c.h.b16 %v265
    %v847 = vunpack.c.l.b16 %v266
    %v848 = vunpack.c.h.b16 %v266
    %v849 = vunpack.c.l.b16 %v267
    %v850 = vunpack.c.h.b16 %v267
    %v851 = vunpack.c.l.b16 %v268
    %v852 = vunpack.c.h.b16 %v268
    %v853 = vunpack.c.l.b16 %v269
    %v854 = vunpack.c.h.b16 %v269
    %v855 = vunpack.c.l.b16 %v270
    %v856 = vunpack.c.h.b16 %v270
    %v857 = vunpack.c.l.b16 %v271
    %v858 = vunpack.c.h.b16 %v271
    %v859 = vunpack.c.l.b16 %v272
    %v860 = vunpack.c.h.b16 %v272
    %v861 = vunpack.c.l.b16 %v273
    %v862 = vunpack.c.h.b16 %v273
    %v863 = vunpack.c.l.b16 %v274
    %v864 = vunpack.c.h.b16 %v274
    %v865 = vunpack.c.l.b16 %v275
    %v866 = vunpack.c.h.b16 %v275
    %v867 = vunpack.c.l.b16 %v276
    %v868 = vunpack.c.h.b16 %v276
    %v869 = vunpack.c.l.b16 %v277
    %v870 = vunpack.c.h.b16 %v277
    %v871 = vunpack.c.l.b16 %v278
    %v872 = vunpack.c.h.b16 %v278
    %v873 = vunpack.c.l.b16 %v279
    %v874 = vunpack.c.h.b16 %v279
    %v875 = vunpack.c.l.b16 %v280
    %v876 = vunpack.c.h.b16 %v280
    %v877 = vunpack.c.l.b16 %v281
    %v878 = vunpack.c.h.b16 %v281
    %v879 = vunpack.c.l.b16 %v282
    %v880 = vunpack.c.h.b16 %v282
    %v881 = vpack.c.b16 %v501, %v497
    %v882 = vpack.c.b16 %v502, %v498
    %v883 = vpack.c.b16 %v503, %v499
    %v884 = vpack.c.b16 %v504, %v500
    %v885 = vpack.c.b16 %v509, %v505
    %v886 = vpack.c.b16 %v510, %v506
    %v887 = vpack.c.b16 %v511, %v507
    %v888 = vpack.c.b16 %v512, %v508
    %v889 = vpack.c.b16 %v517, %v513
    %v890 = vpack.c.b16 %v518, %v514
    %v891 = vpack.c.b16 %v519, %v515
    %v892 = vpack.c.b16 %v520, %v516
    %v893 = vpack.c.b16 %v525, %v521
    %v894 = vpack.c.b16 %v526, %v522
    %v895 = vpack.c.b16 %v527, %v523
    %v896 = vpack.c.b16 %v528, %v524
    %v897 = vpack.c.b16 %v533, %v529
    %v898 = vpack.c.b16 %v534, %v530
    %v899 = vpack.c.b16 %v535, %v531
    %v900 = vpack.c.b16 %v536, %v532
    %v901 = vpack.c.b16 %v541, %v537
    %v902 = vpack.c.b16 %v542, %v538
    %v903 = vpack.c.b16 %v543, %v539
    %v904 = vpack.c.b16 %v544, %v540
    %v905 = vpack.c.b16 %v549, %v545
    %v906 = vpack.c.b16 %v550, %v546
    %v907 = vpack.c.b16 %v551, %v547
    %v908 = vpack.c.b16 %v552, %v548
    %v909 = vpack.c.b16 %v557, %v553
    %v910 = vpack.c.b16 %v558, %v554
    %v911 = vpack.c.b16 %v559, %v555
    %v912 = vpack.c.b16 %v560, %v556
    %v913 = vpack.c.b16 %v565, %v561
    %v914 = vpack.c.b16 %v566, %v562
    %v915 = vpack.c.b16 %v567, %v563
    %v916 = vpack.c.b16 %v568, %v564
    %v917 = vpack.c.b16 %v573, %v569
    %v918 = vpack.c.b16 %v574, %v570
    %v919 = vpack.c.b16 %v575, %v571
    %v920 = vpack.c.b16 %v576, %v572
    %v921 = vpack.c.b16 %v581, %v577
    %v922 = vpack.c.b16 %v582, %v578
    %v923 = vpack.c.b16 %v583, %v579
    %v924 = vpack.c.b16 %v584, %v580
    %v925 = vpack.c.b16 %v589, %v585
    %v926 = vpack.c.b16 %v590, %v586
    %v927 = vpack.c.b16 %v591, %v587
    %v928 = vpack.c.b16 %v592, %v588
    %v929 = vpack.c.b16 %v597, %v593
    %v930 = vpack.c.b16 %v598, %v594
    %v931 = vpack.c.b16 %v599, %v595
    %v932 = vpack.c.b16 %v600, %v596
    %v933 = vpack.c.b16 %v605, %v601
    %v934 = vpack.c.b16 %v606, %v602
    %v935 = vpack.c.b16 %v607, %v603
    %v936 = vpack.c.b16 %v608, %v604
    %v937 = vpack.c.b16 %v613, %v609
    %v938 = vpack.c.b16 %v614, %v610
    %v939 = vpack.c.b16 %v615, %v611
    %v940 = vpack.c.b16 %v616, %v612
    %v941 = vpack.c.b16 %v621, %v617
    %v942 = vpack.c.b16 %v622, %v618
    %v943 = vpack.c.b16 %v623, %v619
    %v944 = vpack.c.b16 %v624, %v620
    %v945 = vpack.c.b16 %v629, %v625
    %v946 = vpack.c.b16 %v630, %v626
    %v947 = vpack.c.b16 %v631, %v627
    %v948 = vpack.c.b16 %v632, %v628
    %v949 = vpack.c.b16 %v637, %v633
    %v950 = vpack.c.b16 %v638, %v634
    %v951 = vpack.c.b16 %v639, %v635
    %v952 = vpack.c.b16 %v640, %v636
    %v953 = vpack.c.b16 %v645, %v641
    %v954 = vpack.c.b16 %v646, %v642
    %v955 = vpack.c.b16 %v647, %v643
    %v956 = vpack.c.b16 %v648, %v644
    %v957 = vpack.c.b16 %v653, %v649
    %v958 = vpack.c.b16 %v654, %v650
    %v959 = vpack.c.b16 %v655, %v651
    %v960 = vpack.c.b16 %v656, %v652
    %v961 = vpack.c.b16 %v661, %v657
    %v962 = vpack.c.b16 %v662, %v658
    %v963 = vpack.c.b16 %v663, %v659
    %v964 = vpack.c.b16 %v664, %v660
    %v965 = vpack.c.b16 %v669, %v665
    %v966 = vpack.c.b16 %v670, %v666
    %v967 = vpack.c.b16 %v671, %v667
    %v968 = vpack.c.b16 %v672, %v668
    %v969 = vpack.c.b16 %v677, %v673
    %v970 = vpack.c.b16 %v678, %v674
    %v971 = vpack.c.b16 %v679, %v675
    %v972 = vpack.c.b16 %v680, %v676
    %v973 = vpack.c.b16 %v685, %v681
    %v974 = vpack.c.b16 %v686, %v682
    %v975 = vpack.c.b16 %v687, %v683
    %v976 = vpack.c.b16 %v688, %v684
    %v977 = vpack.c.b16 %v693, %v689
    %v978 = vpack.c.b16 %v694, %v690
    %v979 = vpack.c.b16 %v695, %v691
    %v980 = vpack.c.b16 %v696, %v692
    %v981 = vpack.c.b16 %v701, %v697
    %v982 = vpack.c.b16 %v702, %v698
    %v983 = vpack.c.b16 %v703, %v699
    %v984 = vpack.c.b16 %v704, %v700
    %v985 = vpack.c.b16 %v709, %v705
    %v986 = vpack.c.b16 %v710, %v706
    %v987 = vpack.c.b16 %v711, %v707
    %v988 = vpack.c.b16 %v712, %v708
    %v989 = vpack.c.b16 %v717, %v713
    %v990 = vpack.c.b16 %v718, %v714
    %v991 = vpack.c.b16 %v719, %v715
    %v992 = vpack.c.b16 %v720, %v716
    %v993 = vpack.c.b16 %v725, %v721
    %v994 = vpack.c.b16 %v726, %v722
    %v995 = vpack.c.b16 %v727, %v723
    %v996 = vpack.c.b16 %v728, %v724
    %v997 = vpack.c.b16 %v733, %v729
    %v998 = vpack.c.b16 %v734, %v730
    %v999 = vpack.c.b16 %v735, %v731
    %v1000 = vpack.c.b16 %v736, %v732
    %v1001 = vpack.c.b16 %v741, %v737
    %v1002 = vpack.c.b16 %v742, %v738
    %v1003 = vpack.c.b16 %v743, %v739
    %v1004 = vpack.c.b16 %v744, %v740
    %v1005 = vpack.c.b16 %v749, %v745
    %v1006 = vpack.c.b16 %v750, %v746
    %v1007 = vpack.c.b16 %v751, %v747
    %v1008 = vpack.c.b16 %v752, %v748
    %v1009 = vpack.c.b16 %v757, %v753
    %v1010 = vpack.c.b16 %v758, %v754
    %v1011 = vpack.c.b16 %v759, %v755
    %v1012 = vpack.c.b16 %v760, %v756
    %v1013 = vpack.c.b16 %v765, %v761
    %v1014 = vpack.c.b16 %v766, %v762
    %v1015 = vpack.c.b16 %v767, %v763
    %v1016 = vpack.c.b16 %v768, %v764
    %v1017 = vpack.c.b16 %v773, %v769
    %v1018 = vpack.c.b16 %v774, %v770
    %v1019 = vpack.c.b16 %v775, %v771
    %v1020 = vpack.c.b16 %v776, %v772
    %v1021 = vpack.c.b16 %v781, %v777
    %v1022 = vpack.c.b16 %v782, %v778
    %v1023 = vpack.c.b16 %v783, %v779
    %v1024 = vpack.c.b16 %v784, %v780
    %v1025 = vpack.c.b16 %v789, %v785
    %v1026 = vpack.c.b16 %v790, %v786
    %v1027 = vpack.c.b16 %v791, %v787
    %v1028 = vpack.c.b16 %v792, %v788
    %v1029 = vpack.c.b16 %v797, %v793
    %v1030 = vpack.c.b16 %v798, %v794
    %v1031 = vpack.c.b16 %v799, %v795
    %v1032 = vpack.c.b16 %v800, %v796
    %v1033 = vpack.c.b16 %v805, %v801
    %v1034 = vpack.c.b16 %v806, %v802
    %v1035 = vpack.c.b16 %v807, %v803
    %v1036 = vpack.c.b16 %v808, %v804
    %v1037 = vpack.c.b16 %v813, %v809
    %v1038 = vpack.c.b16 %v814, %v810
    %v1039 = vpack.c.b16 %v815, %v811
    %v1040 = vpack.c.b16 %v816, %v812
    %v1041 = vpack.c.b16 %v821, %v817
    %v1042 = vpack.c.b16 %v822, %v818
    %v1043 = vpack.c.b16 %v823, %v819
    %v1044 = vpack.c.b16 %v824, %v820
    %v1045 = vpack.c.b16 %v829, %v825
    %v1046 = vpack.c.b16 %v830, %v826
    %v1047 = vpack.c.b16 %v831, %v827
    %v1048 = vpack.c.b16 %v832, %v828
    %v1049 = vpack.c.b16 %v837, %v833
    %v1050 = vpack.c.b16 %v838, %v834
    %v1051 = vpack.c.b16 %v839, %v835
    %v1052 = vpack.c.b16 %v840, %v836
    %v1053 = vpack.c.b16 %v845, %v841
    %v1054 = vpack.c.b16 %v846, %v842
    %v1055 = vpack.c.b16 %v847, %v843
    %v1056 = vpack.c.b16 %v848, %v844
    %v1057 = vpack.c.b16 %v853, %v849
    %v1058 = vpack.c.b16 %v854, %v850
    %v1059 = vpack.c.b16 %v855, %v851
    %v1060 = vpack.c.b16 %v856, %v852
    %v1061 = vpack.c.b16 %v861, %v857
    %v1062 = vpack.c.b16 %v862, %v858
    %v1063 = vpack.c.b16 %v863, %v859
    %v1064 = vpack.c.b16 %v864, %v860
    %v1065 = vpack.c.b16 %v869, %v865
    %v1066 = vpack.c.b16 %v870, %v866
    %v1067 = vpack.c.b16 %v871, %v867
    %v1068 = vpack.c.b16 %v872, %v868
    %v1069 = vpack.c.b16 %v877, %v873
    %v1070 = vpack.c.b16 %v878, %v874
    %v1071 = vpack.c.b16 %v879, %v875
    %v1072 = vpack.c.b16 %v880, %v876
    %1265 = vmatprep.subr.bf16.mxu0 %v910
    %1266 = vmatpush1.bf16.msra.mxu0 %v909
    %1267 = vmatprep.subr.bf16.mxu0 %v906
    %1268 = vmatpush1.bf16.msra.mxu0 %v905
    %1269 = vmatprep.subr.bf16.mxu0 %v902
    %1270 = vmatpush1.bf16.msra.mxu0 %v901
    %1271 = vmatprep.subr.bf16.mxu0 %v898
    %1272 = vmatpush1.bf16.msra.mxu0 %v897
    %1273 = vmatprep.subr.bf16.mxu0 %v894
    %1274 = vmatpush1.bf16.msra.mxu0 %v893
    %1275 = vmatprep.subr.bf16.mxu0 %v890
    %1276 = vmatpush1.bf16.msra.mxu0 %v889
    %1277 = vmatprep.subr.bf16.mxu0 %v886
    %1278 = vmatpush1.bf16.msra.mxu0 %v885
    %1279 = vmatprep.subr.bf16.mxu0 %v882
    %1280 = vmatpush1.bf16.msra.mxu0 %v881
    %1281 = vmatprep.subr.bf16.mxu0 %v942
    %1282 = vmatpush2.bf16.msra.mxu0 %v941
    %1283 = vmatprep.subr.bf16.mxu0 %v938
    %1284 = vmatpush2.bf16.msra.mxu0 %v937
    %1285 = vmatprep.subr.bf16.mxu0 %v934
    %1286 = vmatpush2.bf16.msra.mxu0 %v933
    %1287 = vmatprep.subr.bf16.mxu0 %v930
    %1288 = vmatpush2.bf16.msra.mxu0 %v929
    %1289 = vmatprep.subr.bf16.mxu0 %v926
    %1290 = vmatpush2.bf16.msra.mxu0 %v925
    %1291 = vmatprep.subr.bf16.mxu0 %v922
    %1292 = vmatpush2.bf16.msra.mxu0 %v921
    %1293 = vmatprep.subr.bf16.mxu0 %v918
    %1294 = vmatpush2.bf16.msra.mxu0 %v917
    %1295 = vmatprep.subr.bf16.mxu0 %v914
    %1296 = vmatpush2.bf16.msra.mxu0 %v913
    %1297 = vmatprep.mubr.bf16.mxu0 %v86
    %1298 = vmatmul.mubr.bf16.gmra.mxu0 %v85
    %v1299 = vpop.f32.mrf.mxu0
    %v1300 = vadd.f32 %v288, %v1299
    %v1301 = vpop.f32.mrf.mxu0
    %v1302 = vadd.f32 %v292, %v1301
    %v1303 = vpop.f32.mrf.mxu0
    %v1304 = vpop.f32.mrf.mxu0
    %1305 = vdwg.mxu0
    %1306 = vmatprep.subr.bf16.mxu0 %v974
    %1307 = vmatpush1.bf16.msra.mxu0 %v973
    %1308 = vmatprep.subr.bf16.mxu0 %v970
    %1309 = vmatpush1.bf16.msra.mxu0 %v969
    %1310 = vmatprep.subr.bf16.mxu0 %v966
    %1311 = vmatpush1.bf16.msra.mxu0 %v965
    %1312 = vmatprep.subr.bf16.mxu0 %v962
    %1313 = vmatpush1.bf16.msra.mxu0 %v961
    %1314 = vmatprep.subr.bf16.mxu0 %v958
    %1315 = vmatpush1.bf16.msra.mxu0 %v957
    %1316 = vmatprep.subr.bf16.mxu0 %v954
    %1317 = vmatpush1.bf16.msra.mxu0 %v953
    %1318 = vmatprep.subr.bf16.mxu0 %v950
    %1319 = vmatpush1.bf16.msra.mxu0 %v949
    %1320 = vmatprep.subr.bf16.mxu0 %v946
    %1321 = vmatpush1.bf16.msra.mxu0 %v945
    %1322 = vmatprep.subr.bf16.mxu0 %v1006
    %1323 = vmatpush2.bf16.msra.mxu0 %v1005
    %1324 = vmatprep.subr.bf16.mxu0 %v1002
    %1325 = vmatpush2.bf16.msra.mxu0 %v1001
    %1326 = vmatprep.subr.bf16.mxu0 %v998
    %1327 = vmatpush2.bf16.msra.mxu0 %v997
    %1328 = vmatprep.subr.bf16.mxu0 %v994
    %1329 = vmatpush2.bf16.msra.mxu0 %v993
    %1330 = vmatprep.subr.bf16.mxu0 %v990
    %1331 = vmatpush2.bf16.msra.mxu0 %v989
    %1332 = vmatprep.subr.bf16.mxu0 %v986
    %1333 = vmatpush2.bf16.msra.mxu0 %v985
    %1334 = vmatprep.subr.bf16.mxu0 %v982
    %1335 = vmatpush2.bf16.msra.mxu0 %v981
    %1336 = vmatprep.subr.bf16.mxu0 %v978
    %1337 = vmatpush2.bf16.msra.mxu0 %v977
    %1338 = vmatprep.mubr.bf16.mxu0 %v88
    %1339 = vmatmul.mubr.bf16.gmra.mxu0 %v87
    %v1340 = vpop.f32.mrf.mxu0
    %v1341 = vadd.f32 %v1300, %v1340
    %v1342 = vpop.f32.mrf.mxu0
    %v1343 = vadd.f32 %v1302, %v1342
    %v1344 = vpop.f32.mrf.mxu0
    %v1345 = vpop.f32.mrf.mxu0
    %1346 = vdwg.mxu0
    %1347 = vmatprep.subr.bf16.mxu0 %v1038
    %1348 = vmatpush1.bf16.msra.mxu0 %v1037
    %1349 = vmatprep.subr.bf16.mxu0 %v1034
    %1350 = vmatpush1.bf16.msra.mxu0 %v1033
    %1351 = vmatprep.subr.bf16.mxu0 %v1030
    %1352 = vmatpush1.bf16.msra.mxu0 %v1029
    %1353 = vmatprep.subr.bf16.mxu0 %v1026
    %1354 = vmatpush1.bf16.msra.mxu0 %v1025
    %1355 = vmatprep.subr.bf16.mxu0 %v1022
    %1356 = vmatpush1.bf16.msra.mxu0 %v1021
    %1357 = vmatprep.subr.bf16.mxu0 %v1018
    %1358 = vmatpush1.bf16.msra.mxu0 %v1017
    %1359 = vmatprep.subr.bf16.mxu0 %v1014
    %1360 = vmatpush1.bf16.msra.mxu0 %v1013
    %1361 = vmatprep.subr.bf16.mxu0 %v1010
    %1362 = vmatpush1.bf16.msra.mxu0 %v1009
    %1363 = vmatprep.subr.bf16.mxu0 %v1070
    %1364 = vmatpush2.bf16.msra.mxu0 %v1069
    %1365 = vmatprep.subr.bf16.mxu0 %v1066
    %1366 = vmatpush2.bf16.msra.mxu0 %v1065
    %1367 = vmatprep.subr.bf16.mxu0 %v1062
    %1368 = vmatpush2.bf16.msra.mxu0 %v1061
    %1369 = vmatprep.subr.bf16.mxu0 %v1058
    %1370 = vmatpush2.bf16.msra.mxu0 %v1057
    %1371 = vmatprep.subr.bf16.mxu0 %v1054
    %1372 = vmatpush2.bf16.msra.mxu0 %v1053
    %1373 = vmatprep.subr.bf16.mxu0 %v1050
    %1374 = vmatpush2.bf16.msra.mxu0 %v1049
    %1375 = vmatprep.subr.bf16.mxu0 %v1046
    %1376 = vmatpush2.bf16.msra.mxu0 %v1045
    %1377 = vmatprep.subr.bf16.mxu0 %v1042
    %1378 = vmatpush2.bf16.msra.mxu0 %v1041
    %1379 = vmatprep.mubr.bf16.mxu0 %v90
    %1380 = vmatmul.mubr.bf16.gmra.mxu0 %v89
    %v1381 = vpop.f32.mrf.mxu0
    %v1382 = vadd.f32 %v1341, %v1381
    %v1383 = vpop.f32.mrf.mxu0
    %v1384 = vadd.f32 %v1343, %v1383
    %v1385 = vpop.f32.mrf.mxu0
    %v1386 = vpop.f32.mrf.mxu0
    %1387 = vdwg.mxu0
    %1388 = vmatprep.subr.bf16.mxu0 %v912
    %1389 = vmatpush1.bf16.msra.mxu0 %v911
    %1390 = vmatprep.subr.bf16.mxu0 %v908
    %1391 = vmatpush1.bf16.msra.mxu0 %v907
    %1392 = vmatprep.subr.bf16.mxu0 %v904
    %1393 = vmatpush1.bf16.msra.mxu0 %v903
    %1394 = vmatprep.subr.bf16.mxu0 %v900
    %1395 = vmatpush1.bf16.msra.mxu0 %v899
    %1396 = vmatprep.subr.bf16.mxu0 %v896
    %1397 = vmatpush1.bf16.msra.mxu0 %v895
    %1398 = vmatprep.subr.bf16.mxu0 %v892
    %1399 = vmatpush1.bf16.msra.mxu0 %v891
    %1400 = vmatprep.subr.bf16.mxu0 %v888
    %1401 = vmatpush1.bf16.msra.mxu0 %v887
    %1402 = vmatprep.subr.bf16.mxu0 %v884
    %1403 = vmatpush1.bf16.msra.mxu0 %v883
    %1404 = vmatprep.subr.bf16.mxu0 %v944
    %1405 = vmatpush2.bf16.msra.mxu0 %v943
    %1406 = vmatprep.subr.bf16.mxu0 %v940
    %1407 = vmatpush2.bf16.msra.mxu0 %v939
    %1408 = vmatprep.subr.bf16.mxu0 %v936
    %1409 = vmatpush2.bf16.msra.mxu0 %v935
    %1410 = vmatprep.subr.bf16.mxu0 %v932
    %1411 = vmatpush2.bf16.msra.mxu0 %v931
    %1412 = vmatprep.subr.bf16.mxu0 %v928
    %1413 = vmatpush2.bf16.msra.mxu0 %v927
    %1414 = vmatprep.subr.bf16.mxu0 %v924
    %1415 = vmatpush2.bf16.msra.mxu0 %v923
    %1416 = vmatprep.subr.bf16.mxu0 %v920
    %1417 = vmatpush2.bf16.msra.mxu0 %v919
    %1418 = vmatprep.subr.bf16.mxu0 %v916
    %1419 = vmatpush2.bf16.msra.mxu0 %v915
    %1420 = vmatprep.mubr.bf16.mxu0 %v86
    %1421 = vmatmul.mubr.bf16.gmra.mxu0 %v85
    %v1422 = vpop.f32.mrf.mxu0
    %v1423 = vadd.f32 %v296, %v1422
    %v1424 = vpop.f32.mrf.mxu0
    %v1425 = vadd.f32 %v300, %v1424
    %v1426 = vpop.f32.mrf.mxu0
    %v1427 = vpop.f32.mrf.mxu0
    %1428 = vdwg.mxu0
    %1429 = vmatprep.subr.bf16.mxu0 %v976
    %1430 = vmatpush1.bf16.msra.mxu0 %v975
    %1431 = vmatprep.subr.bf16.mxu0 %v972
    %1432 = vmatpush1.bf16.msra.mxu0 %v971
    %1433 = vmatprep.subr.bf16.mxu0 %v968
    %1434 = vmatpush1.bf16.msra.mxu0 %v967
    %1435 = vmatprep.subr.bf16.mxu0 %v964
    %1436 = vmatpush1.bf16.msra.mxu0 %v963
    %1437 = vmatprep.subr.bf16.mxu0 %v960
    %1438 = vmatpush1.bf16.msra.mxu0 %v959
    %1439 = vmatprep.subr.bf16.mxu0 %v956
    %1440 = vmatpush1.bf16.msra.mxu0 %v955
    %1441 = vmatprep.subr.bf16.mxu0 %v952
    %1442 = vmatpush1.bf16.msra.mxu0 %v951
    %1443 = vmatprep.subr.bf16.mxu0 %v948
    %1444 = vmatpush1.bf16.msra.mxu0 %v947
    %1445 = vmatprep.subr.bf16.mxu0 %v1008
    %1446 = vmatpush2.bf16.msra.mxu0 %v1007
    %1447 = vmatprep.subr.bf16.mxu0 %v1004
    %1448 = vmatpush2.bf16.msra.mxu0 %v1003
    %1449 = vmatprep.subr.bf16.mxu0 %v1000
    %1450 = vmatpush2.bf16.msra.mxu0 %v999
    %1451 = vmatprep.subr.bf16.mxu0 %v996
    %1452 = vmatpush2.bf16.msra.mxu0 %v995
    %1453 = vmatprep.subr.bf16.mxu0 %v992
    %1454 = vmatpush2.bf16.msra.mxu0 %v991
    %1455 = vmatprep.subr.bf16.mxu0 %v988
    %1456 = vmatpush2.bf16.msra.mxu0 %v987
    %1457 = vmatprep.subr.bf16.mxu0 %v984
    %1458 = vmatpush2.bf16.msra.mxu0 %v983
    %1459 = vmatprep.subr.bf16.mxu0 %v980
    %1460 = vmatpush2.bf16.msra.mxu0 %v979
    %1461 = vmatprep.mubr.bf16.mxu0 %v88
    %1462 = vmatmul.mubr.bf16.gmra.mxu0 %v87
    %v1463 = vpop.f32.mrf.mxu0
    %v1464 = vadd.f32 %v1423, %v1463
    %v1465 = vpop.f32.mrf.mxu0
    %v1466 = vadd.f32 %v1425, %v1465
    %v1467 = vpop.f32.mrf.mxu0
    %v1468 = vpop.f32.mrf.mxu0
    %1469 = vdwg.mxu0
    %1470 = vmatprep.subr.bf16.mxu0 %v1040
    %1471 = vmatpush1.bf16.msra.mxu0 %v1039
    %1472 = vmatprep.subr.bf16.mxu0 %v1036
    %1473 = vmatpush1.bf16.msra.mxu0 %v1035
    %1474 = vmatprep.subr.bf16.mxu0 %v1032
    %1475 = vmatpush1.bf16.msra.mxu0 %v1031
    %1476 = vmatprep.subr.bf16.mxu0 %v1028
    %1477 = vmatpush1.bf16.msra.mxu0 %v1027
    %1478 = vmatprep.subr.bf16.mxu0 %v1024
    %1479 = vmatpush1.bf16.msra.mxu0 %v1023
    %1480 = vmatprep.subr.bf16.mxu0 %v1020
    %1481 = vmatpush1.bf16.msra.mxu0 %v1019
    %1482 = vmatprep.subr.bf16.mxu0 %v1016
    %1483 = vmatpush1.bf16.msra.mxu0 %v1015
    %1484 = vmatprep.subr.bf16.mxu0 %v1012
    %1485 = vmatpush1.bf16.msra.mxu0 %v1011
    %1486 = vmatprep.subr.bf16.mxu0 %v1072
    %1487 = vmatpush2.bf16.msra.mxu0 %v1071
    %1488 = vmatprep.subr.bf16.mxu0 %v1068
    %1489 = vmatpush2.bf16.msra.mxu0 %v1067
    %1490 = vmatprep.subr.bf16.mxu0 %v1064
    %1491 = vmatpush2.bf16.msra.mxu0 %v1063
    %1492 = vmatprep.subr.bf16.mxu0 %v1060
    %1493 = vmatpush2.bf16.msra.mxu0 %v1059
    %1494 = vmatprep.subr.bf16.mxu0 %v1056
    %1495 = vmatpush2.bf16.msra.mxu0 %v1055
    %1496 = vmatprep.subr.bf16.mxu0 %v1052
    %1497 = vmatpush2.bf16.msra.mxu0 %v1051
    %1498 = vmatprep.subr.bf16.mxu0 %v1048
    %1499 = vmatpush2.bf16.msra.mxu0 %v1047
    %1500 = vmatprep.subr.bf16.mxu0 %v1044
    %1501 = vmatpush2.bf16.msra.mxu0 %v1043
    %1502 = vmatprep.mubr.bf16.mxu0 %v90
    %1503 = vmatmul.mubr.bf16.gmra.mxu0 %v89
    %v1504 = vpop.f32.mrf.mxu0
    %v1505 = vadd.f32 %v1464, %v1504
    %v1506 = vpop.f32.mrf.mxu0
    %v1507 = vadd.f32 %v1466, %v1506
    %v1508 = vpop.f32.mrf.mxu0
    %v1509 = vpop.f32.mrf.mxu0
    %1510 = vdwg.mxu0
    %v1511 = vtanh.pop %v1382
    %v1512 = vtanh.pop %v1384
    %v1513 = vtanh.pop %v1505
    %v1514 = vtanh.pop %v1507
    %v1515 = vpack.c.bf16 %v1511, %v1511
    %v1516 = vpack.c.bf16 %v1512, %v1512
    %v1517 = vpack.c.bf16 %v1513, %v1513
    %v1518 = vpack.c.bf16 %v1514, %v1514
    %v1519 = vld [vmem:[#allocation8] sm:$0xf]
    %v1520 = vld [vmem:[#allocation8 + $0x4] sm:$0xf]
    %v1521 = vld [vmem:[#allocation8 + $0x8] sm:$0xf]
    %v1522 = vld [vmem:[#allocation8 + $0xc] sm:$0xf]
    %v1523 = vld [vmem:[#allocation8 + $0x10] sm:$0xf]
    %v1524 = vld [vmem:[#allocation8 + $0x14] sm:$0xf]
    %v1525 = vld [vmem:[#allocation8 + $0x18] sm:$0xf]
    %v1526 = vld [vmem:[#allocation8 + $0x1c] sm:$0xf]
    %v1527 = vld [vmem:[#allocation8 + $0x20] sm:$0xf]
    %v1528 = vld [vmem:[#allocation8 + $0x24] sm:$0xf]
    %v1529 = vld [vmem:[#allocation8 + $0x28] sm:$0xf]
    %v1530 = vld [vmem:[#allocation8 + $0x2c] sm:$0xf]
    %v1531 = vld [vmem:[#allocation8 + $0x30] sm:$0xf]
    %v1532 = vld [vmem:[#allocation8 + $0x34] sm:$0xf]
    %v1533 = vld [vmem:[#allocation8 + $0x38] sm:$0xf]
    %v1534 = vld [vmem:[#allocation8 + $0x3c] sm:$0xf]
    %v1535 = vld [vmem:[#allocation8 + $0x40] sm:$0xf]
    %v1536 = vld [vmem:[#allocation8 + $0x44] sm:$0xf]
    %v1537 = vld [vmem:[#allocation8 + $0x48] sm:$0xf]
    %v1538 = vld [vmem:[#allocation8 + $0x4c] sm:$0xf]
    %v1539 = vld [vmem:[#allocation8 + $0x50] sm:$0xf]
    %v1540 = vld [vmem:[#allocation8 + $0x54] sm:$0xf]
    %v1541 = vld [vmem:[#allocation8 + $0x58] sm:$0xf]
    %v1542 = vld [vmem:[#allocation8 + $0x5c] sm:$0xf]
    %v1543 = vld [vmem:[#allocation8 + $0x60] sm:$0xf]
    %v1544 = vld [vmem:[#allocation8 + $0x64] sm:$0xf]
    %v1545 = vld [vmem:[#allocation8 + $0x68] sm:$0xf]
    %v1546 = vld [vmem:[#allocation8 + $0x6c] sm:$0xf]
    %v1547 = vld [vmem:[#allocation8 + $0x70] sm:$0xf]
    %v1548 = vld [vmem:[#allocation8 + $0x74] sm:$0xf]
    %v1549 = vld [vmem:[#allocation8 + $0x78] sm:$0xf]
    %v1550 = vld [vmem:[#allocation8 + $0x7c] sm:$0xf]
    %v1551 = vld [vmem:[#allocation8 + $0x80] sm:$0xf]
    %v1552 = vld [vmem:[#allocation8 + $0x84] sm:$0xf]
    %v1553 = vld [vmem:[#allocation8 + $0x88] sm:$0xf]
    %v1554 = vld [vmem:[#allocation8 + $0x8c] sm:$0xf]
    %v1555 = vld [vmem:[#allocation8 + $0x90] sm:$0xf]
    %v1556 = vld [vmem:[#allocation8 + $0x94] sm:$0xf]
    %v1557 = vld [vmem:[#allocation8 + $0x98] sm:$0xf]
    %v1558 = vld [vmem:[#allocation8 + $0x9c] sm:$0xf]
    %v1559 = vld [vmem:[#allocation8 + $0xa0] sm:$0xf]
    %v1560 = vld [vmem:[#allocation8 + $0xa4] sm:$0xf]
    %v1561 = vld [vmem:[#allocation8 + $0xa8] sm:$0xf]
    %v1562 = vld [vmem:[#allocation8 + $0xac] sm:$0xf]
    %v1563 = vld [vmem:[#allocation8 + $0xb0] sm:$0xf]
    %v1564 = vld [vmem:[#allocation8 + $0xb4] sm:$0xf]
    %v1565 = vld [vmem:[#allocation8 + $0xb8] sm:$0xf]
    %v1566 = vld [vmem:[#allocation8 + $0xbc] sm:$0xf]
    %v1567 = vld [vmem:[#allocation8 + $0xc0] sm:$0xf]
    %v1568 = vld [vmem:[#allocation8 + $0xc4] sm:$0xf]
    %v1569 = vld [vmem:[#allocation8 + $0xc8] sm:$0xf]
    %v1570 = vld [vmem:[#allocation8 + $0xcc] sm:$0xf]
    %v1571 = vld [vmem:[#allocation8 + $0xd0] sm:$0xf]
    %v1572 = vld [vmem:[#allocation8 + $0xd4] sm:$0xf]
    %v1573 = vld [vmem:[#allocation8 + $0xd8] sm:$0xf]
    %v1574 = vld [vmem:[#allocation8 + $0xdc] sm:$0xf]
    %v1575 = vld [vmem:[#allocation8 + $0xe0] sm:$0xf]
    %v1576 = vld [vmem:[#allocation8 + $0xe4] sm:$0xf]
    %v1577 = vld [vmem:[#allocation8 + $0xe8] sm:$0xf]
    %v1578 = vld [vmem:[#allocation8 + $0xec] sm:$0xf]
    %v1579 = vld [vmem:[#allocation8 + $0xf0] sm:$0xf]
    %v1580 = vld [vmem:[#allocation8 + $0xf4] sm:$0xf]
    %v1581 = vld [vmem:[#allocation8 + $0xf8] sm:$0xf]
    %v1582 = vld [vmem:[#allocation8 + $0xfc] sm:$0xf]
    %v1583 = vld [vmem:[%s4] sm:$0x1]
    %v1585 = vlaneseq
    %v1586 = vshrl.u32 %v1585, 7
    %v1587 = vsub.s32 0, %v1586
    %v1588 = vrot.slane %v1583, %v1587
    %v1654 = vunpack.c.l.b16 %v1519
    %v1655 = vunpack.c.l.b16 %v1520
    %v1656 = vunpack.c.l.b16 %v1521
    %v1657 = vunpack.c.l.b16 %v1522
    %v1658 = vunpack.c.l.b16 %v1523
    %v1659 = vunpack.c.l.b16 %v1524
    %v1660 = vunpack.c.l.b16 %v1525
    %v1661 = vunpack.c.l.b16 %v1526
    %v1662 = vunpack.c.l.b16 %v1527
    %v1663 = vunpack.c.l.b16 %v1528
    %v1664 = vunpack.c.l.b16 %v1529
    %v1665 = vunpack.c.l.b16 %v1530
    %v1666 = vunpack.c.l.b16 %v1531
    %v1667 = vunpack.c.l.b16 %v1532
    %v1668 = vunpack.c.l.b16 %v1533
    %v1669 = vunpack.c.l.b16 %v1534
    %v1670 = vunpack.c.l.b16 %v1535
    %v1671 = vunpack.c.l.b16 %v1536
    %v1672 = vunpack.c.l.b16 %v1537
    %v1673 = vunpack.c.l.b16 %v1538
    %v1674 = vunpack.c.l.b16 %v1539
    %v1675 = vunpack.c.l.b16 %v1540
    %v1676 = vunpack.c.l.b16 %v1541
    %v1677 = vunpack.c.l.b16 %v1542
    %v1678 = vunpack.c.l.b16 %v1543
    %v1679 = vunpack.c.l.b16 %v1544
    %v1680 = vunpack.c.l.b16 %v1545
    %v1681 = vunpack.c.l.b16 %v1546
    %v1682 = vunpack.c.l.b16 %v1547
    %v1683 = vunpack.c.l.b16 %v1548
    %v1684 = vunpack.c.l.b16 %v1549
    %v1685 = vunpack.c.l.b16 %v1550
    %v1686 = vunpack.c.l.b16 %v1551
    %v1687 = vunpack.c.l.b16 %v1552
    %v1688 = vunpack.c.l.b16 %v1553
    %v1689 = vunpack.c.l.b16 %v1554
    %v1690 = vunpack.c.l.b16 %v1555
    %v1691 = vunpack.c.l.b16 %v1556
    %v1692 = vunpack.c.l.b16 %v1557
    %v1693 = vunpack.c.l.b16 %v1558
    %v1694 = vunpack.c.l.b16 %v1559
    %v1695 = vunpack.c.l.b16 %v1560
    %v1696 = vunpack.c.l.b16 %v1561
    %v1697 = vunpack.c.l.b16 %v1562
    %v1698 = vunpack.c.l.b16 %v1563
    %v1699 = vunpack.c.l.b16 %v1564
    %v1700 = vunpack.c.l.b16 %v1565
    %v1701 = vunpack.c.l.b16 %v1566
    %v1702 = vunpack.c.l.b16 %v1567
    %v1703 = vunpack.c.l.b16 %v1568
    %v1704 = vunpack.c.l.b16 %v1569
    %v1705 = vunpack.c.l.b16 %v1570
    %v1706 = vunpack.c.l.b16 %v1571
    %v1707 = vunpack.c.l.b16 %v1572
    %v1708 = vunpack.c.l.b16 %v1573
    %v1709 = vunpack.c.l.b16 %v1574
    %v1710 = vunpack.c.l.b16 %v1575
    %v1711 = vunpack.c.l.b16 %v1576
    %v1712 = vunpack.c.l.b16 %v1577
    %v1713 = vunpack.c.l.b16 %v1578
    %v1714 = vunpack.c.l.b16 %v1579
    %v1715 = vunpack.c.l.b16 %v1580
    %v1716 = vunpack.c.l.b16 %v1581
    %v1717 = vunpack.c.l.b16 %v1582
    %v1718 = vpack.c.b16 %v1655, %v1654
    %v1719 = vpack.c.b16 %v1657, %v1656
    %v1720 = vpack.c.b16 %v1659, %v1658
    %v1721 = vpack.c.b16 %v1661, %v1660
    %v1722 = vpack.c.b16 %v1663, %v1662
    %v1723 = vpack.c.b16 %v1665, %v1664
    %v1724 = vpack.c.b16 %v1667, %v1666
    %v1725 = vpack.c.b16 %v1669, %v1668
    %v1726 = vpack.c.b16 %v1671, %v1670
    %v1727 = vpack.c.b16 %v1673, %v1672
    %v1728 = vpack.c.b16 %v1675, %v1674
    %v1729 = vpack.c.b16 %v1677, %v1676
    %v1730 = vpack.c.b16 %v1679, %v1678
    %v1731 = vpack.c.b16 %v1681, %v1680
    %v1732 = vpack.c.b16 %v1683, %v1682
    %v1733 = vpack.c.b16 %v1685, %v1684
    %v1734 = vpack.c.b16 %v1687, %v1686
    %v1735 = vpack.c.b16 %v1689, %v1688
    %v1736 = vpack.c.b16 %v1691, %v1690
    %v1737 = vpack.c.b16 %v1693, %v1692
    %v1738 = vpack.c.b16 %v1695, %v1694
    %v1739 = vpack.c.b16 %v1697, %v1696
    %v1740 = vpack.c.b16 %v1699, %v1698
    %v1741 = vpack.c.b16 %v1701, %v1700
    %v1742 = vpack.c.b16 %v1703, %v1702
    %v1743 = vpack.c.b16 %v1705, %v1704
    %v1744 = vpack.c.b16 %v1707, %v1706
    %v1745 = vpack.c.b16 %v1709, %v1708
    %v1746 = vpack.c.b16 %v1711, %v1710
    %v1747 = vpack.c.b16 %v1713, %v1712
    %v1748 = vpack.c.b16 %v1715, %v1714
    %v1749 = vpack.c.b16 %v1717, %v1716
    %1782 = vmatprep.subr.bf16.mxu0 0
    %1783 = vmatpush1.bf16.msra.mxu0 %v1725
    %1784 = vmatprep.subr.bf16.mxu0 0
    %1785 = vmatpush1.bf16.msra.mxu0 %v1724
    %1786 = vmatprep.subr.bf16.mxu0 0
    %1787 = vmatpush1.bf16.msra.mxu0 %v1723
    %1788 = vmatprep.subr.bf16.mxu0 0
    %1789 = vmatpush1.bf16.msra.mxu0 %v1722
    %1790 = vmatprep.subr.bf16.mxu0 0
    %1791 = vmatpush1.bf16.msra.mxu0 %v1721
    %1792 = vmatprep.subr.bf16.mxu0 0
    %1793 = vmatpush1.bf16.msra.mxu0 %v1720
    %1794 = vmatprep.subr.bf16.mxu0 0
    %1795 = vmatpush1.bf16.msra.mxu0 %v1719
    %1796 = vmatprep.subr.bf16.mxu0 0
    %1797 = vmatpush1.bf16.msra.mxu0 %v1718
    %1798 = vmatprep.subr.bf16.mxu0 0
    %1799 = vmatpush2.bf16.msra.mxu0 %v1733
    %1800 = vmatprep.subr.bf16.mxu0 0
    %1801 = vmatpush2.bf16.msra.mxu0 %v1732
    %1802 = vmatprep.subr.bf16.mxu0 0
    %1803 = vmatpush2.bf16.msra.mxu0 %v1731
    %1804 = vmatprep.subr.bf16.mxu0 0
    %1805 = vmatpush2.bf16.msra.mxu0 %v1730
    %1806 = vmatprep.subr.bf16.mxu0 0
    %1807 = vmatpush2.bf16.msra.mxu0 %v1729
    %1808 = vmatprep.subr.bf16.mxu0 0
    %1809 = vmatpush2.bf16.msra.mxu0 %v1728
    %1810 = vmatprep.subr.bf16.mxu0 0
    %1811 = vmatpush2.bf16.msra.mxu0 %v1727
    %1812 = vmatprep.subr.bf16.mxu0 0
    %1813 = vmatpush2.bf16.msra.mxu0 %v1726
    %1814 = vmatprep.mubr.bf16.mxu0 %v1516
    %1815 = vmatmul.mubr.bf16.gmra.mxu0 %v1515
    %v1816 = vpop.f32.mrf.mxu0
    %v1817 = vadd.f32 %v1588, %v1816
    %v1818 = vpop.f32.mrf.mxu0
    %v1819 = vpop.f32.mrf.mxu0
    %v1820 = vpop.f32.mrf.mxu0
    %1821 = vdwg.mxu0
    %1822 = vmatprep.subr.bf16.mxu0 0
    %1823 = vmatpush1.bf16.msra.mxu0 %v1741
    %1824 = vmatprep.subr.bf16.mxu0 0
    %1825 = vmatpush1.bf16.msra.mxu0 %v1740
    %1826 = vmatprep.subr.bf16.mxu0 0
    %1827 = vmatpush1.bf16.msra.mxu0 %v1739
    %1828 = vmatprep.subr.bf16.mxu0 0
    %1829 = vmatpush1.bf16.msra.mxu0 %v1738
    %1830 = vmatprep.subr.bf16.mxu0 0
    %1831 = vmatpush1.bf16.msra.mxu0 %v1737
    %1832 = vmatprep.subr.bf16.mxu0 0
    %1833 = vmatpush1.bf16.msra.mxu0 %v1736
    %1834 = vmatprep.subr.bf16.mxu0 0
    %1835 = vmatpush1.bf16.msra.mxu0 %v1735
    %1836 = vmatprep.subr.bf16.mxu0 0
    %1837 = vmatpush1.bf16.msra.mxu0 %v1734
    %1838 = vmatprep.subr.bf16.mxu0 0
    %1839 = vmatpush2.bf16.msra.mxu0 %v1749
    %1840 = vmatprep.subr.bf16.mxu0 0
    %1841 = vmatpush2.bf16.msra.mxu0 %v1748
    %1842 = vmatprep.subr.bf16.mxu0 0
    %1843 = vmatpush2.bf16.msra.mxu0 %v1747
    %1844 = vmatprep.subr.bf16.mxu0 0
    %1845 = vmatpush2.bf16.msra.mxu0 %v1746
    %1846 = vmatprep.subr.bf16.mxu0 0
    %1847 = vmatpush2.bf16.msra.mxu0 %v1745
    %1848 = vmatprep.subr.bf16.mxu0 0
    %1849 = vmatpush2.bf16.msra.mxu0 %v1744
    %1850 = vmatprep.subr.bf16.mxu0 0
    %1851 = vmatpush2.bf16.msra.mxu0 %v1743
    %1852 = vmatprep.subr.bf16.mxu0 0
    %1853 = vmatpush2.bf16.msra.mxu0 %v1742
    %1854 = vmatprep.mubr.bf16.mxu0 %v1518
    %1855 = vmatmul.mubr.bf16.gmra.mxu0 %v1517
    %v1856 = vpop.f32.mrf.mxu0
    %v1857 = vadd.f32 %v1817, %v1856
    %v1858 = vpop.f32.mrf.mxu0
    %v1859 = vpop.f32.mrf.mxu0
    %v1860 = vpop.f32.mrf.mxu0
    %1861 = vdwg.mxu0
    %1862 = vst [vmem:[#allocation10] sm:$0xff] %v1857
    // Predicated region
    $region38: #{model_fc_forward.1} parent=1 // pred_check
      _
    $region39: #{model_fc_forward.1} parent=1 // pred_check_branch
      %1864 = sbr.rel (0) target = $region41
    $region40: #{model_fc_forward.1} parent=1 // pred_region
      %s1866 = ssub.s32 128, 128
      %1867 = vsyncadd [#allocation4], %s1866
      %s1869 = sshll.u32 [#allocation10], 4
      %s1870 = int_to_ptr.vmem [resolvable:$true] %s1869
      %1872 = dma.vmem_to_hbm [thread:$0]  %s1870, 128, %s5, [#allocation4]
    $region41: #{model_fc_forward.1} parent=1 // pred_fallthru
      _
    // Predicated region
    $region42: #{model_fc_forward.1} parent=1 // pred_check
      _
    $region43: #{model_fc_forward.1} parent=1 // pred_check_branch
      %1874 = sbr.rel (0) target = $region45
    $region44: #{model_fc_forward.1} parent=1 // pred_region
      %1875 = dma.done [#allocation4], 128
    $region45: #{model_fc_forward.1} parent=1 // pred_fallthru
      _
    %1876 = vsyncpa [#allocation3], 1
    %1877 = vsyncpa [#allocation6], 1
    %1878 = vsyncpa [#allocation9], 1
    %1879 = vsyncpa [#allocation4], 1

</llo_original>
